<compile_context>
chip_gen: v6e
topology: v6e:2x2x1
jax: 0.10.0
libtpu: 0.0.40
codegen_flags: <defaults>
</compile_context>

<pallas_src>
import functools

import jax
import jax.numpy as jnp
from jax.experimental import pallas as pl
from jax.experimental.pallas import tpu as pltpu


# ------------------------------ tiling helpers ------------------------------

def _round_up(v, m):
    return (v + m - 1) // m * m


def _pick_flat_tile(n, target):
    """Row tile for flattened-pixel matmuls: multiple of 8, <= target, and small
    enough that the grid has >= 2 steps whenever n allows it (pipelining + the
    second TensorCore on v7x)."""
    n8 = _round_up(n, 8)
    half = max(8, (n8 // 2) // 8 * 8)
    return max(8, min(_round_up(target, 8), half, n8))


def _pick_row_tile(h, target):
    """Largest divisor of h that is <= min(target, h//2): >= 2 row blocks
    whenever possible so the row axis can be split across v7x's two cores."""
    cap = max(1, min(target, max(1, h // 2)))
    for t in range(cap, 0, -1):
        if h % t == 0:
            return t
    return h


# ----------------------------- Pallas kernels -----------------------------

def _fused_conv1x1_kernel(x_ref, w_ref, b_ref, o_ref):
    # x_ref: (TM, Cin); w_ref: (Cin, K); b_ref: (1, K); o_ref: (TM, K)
    o_ref[...] = (jnp.dot(x_ref[...], w_ref[...],
                          preferred_element_type=jnp.float32)
                  + b_ref[...]).astype(o_ref.dtype)


def fused_conv1x1(x_flat, w, b, tile_rows=512):
    """All 1x1 convs at once: [n, Cin] @ [Cin, K] + b, tiled over the pixel dim."""
    n, cin = x_flat.shape
    k = w.shape[1]
    tm = _pick_flat_tile(n, tile_rows)
    n_pad = _round_up(n, tm)
    if n_pad != n:
        x_flat = jnp.pad(x_flat, ((0, n_pad - n), (0, 0)))
    out = pl.pallas_call(
        _fused_conv1x1_kernel,
        grid=(n_pad // tm,),
        in_specs=[pl.BlockSpec((tm, cin), lambda i: (i, 0)),
                  pl.BlockSpec((cin, k), lambda i: (0, 0)),
                  pl.BlockSpec((1, k), lambda i: (0, 0))],
        out_specs=pl.BlockSpec((tm, k), lambda i: (i, 0)),
        out_shape=jax.ShapeDtypeStruct((n_pad, k), jnp.float32),
        compiler_params=pltpu.CompilerParams(
            dimension_semantics=("parallel",),
            vmem_limit_bytes=32 * 1024 * 1024),
    )(x_flat, w, b.reshape(1, k))
    return out[:n]


def _attention_kernel(theta_ref, phi_ref, g_ref, o_ref):
    # theta_ref: (TQ, IC); phi_ref / g_ref: (Nk, IC); o_ref: (TQ, IC)
    th = theta_ref[...]
    ph = phi_ref[...]
    gv = g_ref[...]
    # f[q, k] = sum_c theta[q, c] * phi[k, c]  (theta_x @ phi_x in the torch code)
    f = jnp.einsum("qc,kc->qk", th, ph, preferred_element_type=jnp.float32)
    m = jnp.max(f, axis=-1, keepdims=True)
    p = jnp.exp(f - m)
    ssum = jnp.sum(p, axis=-1, keepdims=True)
    y = jnp.einsum("qk,kc->qc", p, gv, preferred_element_type=jnp.float32)
    # EUP approximate reciprocal + one Newton step (~f32 accurate, no divide).
    inv = pl.reciprocal(ssum, approx=True)
    inv = inv * (2.0 - ssum * inv)
    o_ref[...] = (y * inv).astype(o_ref.dtype)


def spatial_attention(theta_x, phi_x, g_x, q_tile=256):
    """softmax(theta @ phi^T) @ g, batched; tiled over query rows.
    theta: [B, Nq, IC]; phi, g: [B, Nk, IC]. phi/g stay resident across the
    Nq grid axis.  Keep q_tile * Nk * 4B comfortably under the VMEM budget
    (32 MiB scoped default; halve on v7x's 64 MiB part if Nk is very large)."""
    # TODO(synk): cast theta/phi/p to bfloat16 (f32 accumulation) for large
    # IC/Nk on v6e/v7x MXUs; left in f32 here since toy channel counts are tiny.
    b, nq, ic = theta_x.shape
    nk = phi_x.shape[1]
    tq = _pick_flat_tile(nq, q_tile)
    nq_pad = _round_up(nq, tq)
    if nq_pad != nq:
        theta_x = jnp.pad(theta_x, ((0, 0), (0, nq_pad - nq), (0, 0)))
    out = pl.pallas_call(
        _attention_kernel,
        grid=(b, nq_pad // tq),
        in_specs=[pl.BlockSpec((None, tq, ic), lambda bi, qi: (bi, qi, 0)),
                  pl.BlockSpec((None, nk, ic), lambda bi, qi: (bi, 0, 0)),
                  pl.BlockSpec((None, nk, ic), lambda bi, qi: (bi, 0, 0))],
        out_specs=pl.BlockSpec((None, tq, ic), lambda bi, qi: (bi, qi, 0)),
        out_shape=jax.ShapeDtypeStruct((b, nq_pad, ic), jnp.float32),
        compiler_params=pltpu.CompilerParams(
            dimension_semantics=("parallel", "parallel"),
            vmem_limit_bytes=32 * 1024 * 1024),
    )(theta_x, phi_x, g_x)
    return out[:, :nq]


def _conv3x3_bn_res_kernel(yp_ref, w_ref, b_ref, x_ref, o_ref):
    # yp_ref: (H+2, W+2, IC) padded input, resident per batch
    # w_ref:  (9*IC, C) BN-folded weights; b_ref: (1, C) folded bias
    # x_ref / o_ref: (TH, W, C) residual / output row tile
    th, w_out, cout = x_ref.shape
    ic = yp_ref.shape[-1]
    row_start = pl.multiple_of(pl.program_id(1) * th, th)
    win = yp_ref[pl.ds(row_start, th + 2), :, :]          # (TH+2, W+2, IC)
    # im2col taps built in VMEM/vregs (no 9x patches array in HBM)
    taps = [win[dy:dy + th, dx:dx + w_out, :]
            for dy in range(3) for dx in range(3)]
    patches = jnp.concatenate(taps, axis=-1)              # (TH, W, 9*IC)
    patches = patches.reshape(th * w_out, 9 * ic)
    conv = jnp.dot(patches, w_ref[...],
                   preferred_element_type=jnp.float32) + b_ref[...]
    out = conv + x_ref[...].reshape(th * w_out, cout)     # BN folded + residual
    o_ref[...] = out.reshape(th, w_out, cout).astype(o_ref.dtype)


def conv3x3_bn_residual(y_up, w_hwio, b, bn_scale, bn_shift, x_res, row_tile=64):
    """3x3 same-padding conv + BatchNorm(eval) + residual, tiled over (batch, rows).
    y_up: [B, H, W, IC]; w_hwio: [3, 3, IC, C]; x_res: [B, H, W, C]."""
    B, H, W, IC = y_up.shape
    C = w_hwio.shape[-1]
    # Fold conv bias + eval-mode BN into the weight matrix and a single bias.
    w_eff = w_hwio.reshape(9 * IC, C) * bn_scale[None, :]
    b_eff = (b * bn_scale + bn_shift).reshape(1, C)
    y_pad = jnp.pad(y_up, ((0, 0), (1, 1), (1, 1), (0, 0)))   # [B, H+2, W+2, IC]
    th = _pick_row_tile(H, row_tile)
    out = pl.pallas_call(
        _conv3x3_bn_res_kernel,
        grid=(B, H // th),
        in_specs=[
            # whole padded image per batch stays resident (index ignores the row axis)
            pl.BlockSpec((None, H + 2, W + 2, IC), lambda bi, i: (bi, 0, 0, 0)),
            pl.BlockSpec((9 * IC, C), lambda bi, i: (0, 0)),
            pl.BlockSpec((1, C), lambda bi, i: (0, 0)),
            pl.BlockSpec((None, th, W, C), lambda bi, i: (bi, i, 0, 0)),
        ],
        out_specs=pl.BlockSpec((None, th, W, C), lambda bi, i: (bi, i, 0, 0)),
        out_shape=jax.ShapeDtypeStruct((B, H, W, C), jnp.float32),
        compiler_params=pltpu.CompilerParams(
            dimension_semantics=("parallel", "parallel"),
            vmem_limit_bytes=32 * 1024 * 1024),
    )(y_pad, w_eff, b_eff, x_res)
    return out


# ------------------------------- JAX glue ----------------------------------

def maxpool_nhwc(x, k):
    # non-overlapping MaxPool2d(kernel_size=(k,k)) == reshape + max
    B, H, W, C = x.shape
    return x.reshape(B, H // k, k, W // k, k, C).max(axis=(2, 4))


def bilinear_matrix(out_size, in_size):
    # per-axis interpolation weights matching nn.Upsample(bilinear, align_corners=True)
    if in_size == 1:
        return jnp.ones((out_size, 1), jnp.float32)
    if out_size == 1:
        return jnp.zeros((1, in_size), jnp.float32).at[0, 0].set(1.0)
    src = jnp.arange(out_size, dtype=jnp.float32) * (in_size - 1) / (out_size - 1)
    lo = jnp.clip(jnp.floor(src).astype(jnp.int32), 0, in_size - 2)
    frac = src - lo.astype(jnp.float32)
    rows = jnp.arange(out_size)
    m = jnp.zeros((out_size, in_size), jnp.float32)
    m = m.at[rows, lo].add(1.0 - frac)
    m = m.at[rows, lo + 1].add(frac)
    return m


def spatial_attention_wh_forward(x_nchw, params, subsample_rate):
    """Forward of SpatialAttention_WH (subsample_rate != 1 branch of the module)."""
    assert subsample_rate != 1, "only the subsample_rate != 1 branch is implemented"
    s = subsample_rate
    B, C, H, W = x_nchw.shape
    IC = params["w_theta"].shape[1]
    assert H % s == 0 and W % s == 0 and (H // s) % 2 == 0 and (W // s) % 2 == 0
    x = jnp.transpose(x_nchw, (0, 2, 3, 1))                 # NCHW -> NHWC

    xp = maxpool_nhwc(x, s)                                 # [B, H/s, W/s, C]
    hs, ws = H // s, W // s

    # ---- fused theta/g/phi 1x1 convs: one kernel, one read of xp ----
    w_all = jnp.concatenate(
        [params["w_theta"], params["w_g"], params["w_phi"]], axis=1)   # [C, 3*IC]
    b_all = jnp.concatenate(
        [params["b_theta"], params["b_g"], params["b_phi"]])           # [3*IC]
    tpg = fused_conv1x1(xp.reshape(-1, C), w_all, b_all)               # [n, 3*IC]
    tpg = tpg.reshape(B, hs, ws, 3 * IC)
    theta = tpg[..., :IC]
    g_pre = tpg[..., IC:2 * IC]
    phi_pre = tpg[..., 2 * IC:]

    # TODO(synk): the 2x2 max-pool of g/phi and the bilinear upsample stay in XLA
    # glue; a stride-2 spatial downsample has no clean, cheap Mosaic vector form
    # at these tiny channel widths (tensors involved are a few KB).
    g = maxpool_nhwc(g_pre, 2)                              # [B, H/2s, W/2s, IC]
    phi = maxpool_nhwc(phi_pre, 2)
    hg, wg = hs // 2, ws // 2

    theta_x = theta.reshape(B, hs * ws, IC)                 # row-major (h, w) == torch .view
    g_x = g.reshape(B, hg * wg, IC)
    phi_x = phi.reshape(B, hg * wg, IC)

    y = spatial_attention(theta_x, phi_x, g_x)              # [B, Nq, IC]
    y = y.reshape(B, hs, ws, IC)

    # bilinear upsample (align_corners=True) via interpolation matrices
    lh = bilinear_matrix(H, hs)
    lw = bilinear_matrix(W, ws)
    y_up = jnp.einsum("Ph,bhwc,Qw->bPQc", lh, y, lw)        # [B, H, W, IC]

    z = conv3x3_bn_residual(y_up, params["w_W"], params["b_W"],
                            params["bn_scale"], params["bn_shift"], x)
    return jnp.transpose(z, (0, 3, 1, 2))                   # NHWC -> NCHW


# ------------------------- pure-JAX reference check -------------------------

def reference_forward(x_nchw, params, s):
    B, C, H, W = x_nchw.shape
    IC = params["w_theta"].shape[1]
    x = jnp.transpose(x_nchw, (0, 2, 3, 1))
    xp = maxpool_nhwc(x, s)
    theta = jnp.einsum("bhwc,cd->bhwd", xp, params["w_theta"]) + params["b_theta"]
    g_pre = jnp.einsum("bhwc,cd->bhwd", xp, params["w_g"]) + params["b_g"]
    phi_pre = jnp.einsum("bhwc,cd->bhwd", xp, params["w_phi"]) + params["b_phi"]
    g = maxpool_nhwc(g_pre, 2)
    phi = maxpool_nhwc(phi_pre, 2)
    hs, ws = H // s, W // s
    theta_x = theta.reshape(B, hs * ws, IC)
    g_x = g.reshape(B, -1, IC)
    phi_x = phi.reshape(B, -1, IC)
    f = jnp.einsum("bqc,bkc->bqk", theta_x, phi_x)
    attn = jax.nn.softmax(f, axis=-1)
    y = jnp.einsum("bqk,bkc->bqc", attn, g_x).reshape(B, hs, ws, IC)
    lh = bilinear_matrix(H, hs)
    lw = bilinear_matrix(W, ws)
    y_up = jnp.einsum("Ph,bhwc,Qw->bPQc", lh, y, lw)
    conv = jax.lax.conv_general_dilated(
        y_up, params["w_W"], window_strides=(1, 1), padding="SAME",
        dimension_numbers=("NHWC", "HWIO", "NHWC")) + params["b_W"]
    bn = conv * params["bn_scale"] + params["bn_shift"]
    return jnp.transpose(bn + x, (0, 3, 1, 2))


# ----------------------------------- main -----------------------------------

if __name__ == "__main__":
    key = jax.random.PRNGKey(0)
    B, C, H, W = 2, 4, 16, 16       # x: [B, in_channel, H, W]
    IC = 2                          # inter_channel
    s = 2                           # subsample_rate

    keys = jax.random.split(key, 9)
    x = jax.random.normal(keys[0], (B, C, H, W), jnp.float32)

    params = {
        "w_g":     0.3 * jax.random.normal(keys[1], (C, IC), jnp.float32),
        "b_g":     0.1 * jax.random.normal(keys[2], (IC,), jnp.float32),
        "w_theta": 0.3 * jax.random.normal(keys[3], (C, IC), jnp.float32),
        "b_theta": 0.1 * jax.random.normal(keys[4], (IC,), jnp.float32),
        "w_phi":   0.3 * jax.random.normal(keys[5], (C, IC), jnp.float32),
        "b_phi":   0.1 * jax.random.normal(keys[6], (IC,), jnp.float32),
        # NOTE: the PyTorch module zero-initializes W (so z == x); we use nonzero
        # deterministic values so the conv/BN path is actually exercised.
        "w_W":     0.3 * jax.random.normal(keys[7], (3, 3, IC, C), jnp.float32),  # HWIO
        "b_W":     0.1 * jax.random.normal(keys[8], (C,), jnp.float32),
        # BatchNorm2d in eval mode with default stats: gamma=1, beta=0, mean=0, var=1.
        # TODO(synk): training-mode BN (batch statistics) is not reproduced here.
        "bn_scale": jnp.ones((C,), jnp.float32) / jnp.sqrt(1.0 + 1e-5),
        "bn_shift": jnp.zeros((C,), jnp.float32),
    }

    fwd = jax.jit(functools.partial(spatial_attention_wh_forward, subsample_rate=s))
    out = jax.block_until_ready(fwd(x, params))
    assert out.shape == (B, C, H, W), out.shape

    ref = reference_forward(x, params, s)
    # tolerance slightly looser than pure-f32 because the softmax normalisation
    # uses the EUP approximate reciprocal (Newton-refined) inside the kernel.
    assert jnp.allclose(out, ref, rtol=1e-3, atol=1e-3), \
        float(jnp.max(jnp.abs(out - ref)))

    print("KERNEL_OK")
</pallas_src>

<mosaic_0001>
module attributes {stable_mosaic.version = 11 : i64} {
  func.func private @main(%arg0: i32) attributes {dimension_semantics = [#tpu.dimension_semantics<core_parallel>], iteration_bounds = array<i64: 2>, tpu.core_type = #tpu.core_type<sc_scalar_subcore>, window_params = []} {
    return
  }
}

module attributes {stable_mosaic.version = 11 : i64} {
  func.func private @main(%arg0: i32) attributes {dimension_semantics = [#tpu.dimension_semantics<core_parallel>], iteration_bounds = array<i64: 2>, tpu.core_type = #tpu.core_type<sc_scalar_subcore>, window_params = []} {
    return
  }
}

module attributes {stable_mosaic.version = 11 : i64} {
  func.func @_fused_conv1x1_kernel(%arg0: i32, %arg1: memref<64x4xf32, #tpu.memory_space<vmem>>, %arg2: memref<4x6xf32, #tpu.memory_space<vmem>>, %arg3: memref<1x6xf32, #tpu.memory_space<vmem>>, %arg4: memref<64x6xf32, #tpu.memory_space<vmem>>) attributes {dimension_semantics = [#tpu.dimension_semantics<parallel>], iteration_bounds = array<i64: 2>, scalar_prefetch = 0 : i64, scratch_operands = 0 : i64, tpu.core_type = #tpu.core_type<tc>, window_params = [{transform_indices = @transform_0, window_bounds = array<i64: 64, 4>}, {pipeline_mode = #tpu.pipeline_mode<synchronous>, transform_indices = @transform_1, window_bounds = array<i64: 4, 6>}, {pipeline_mode = #tpu.pipeline_mode<synchronous>, transform_indices = @transform_2, window_bounds = array<i64: 1, 6>}, {transform_indices = @transform_3, window_bounds = array<i64: 64, 6>}]} {
    %c0 = arith.constant 0 : index
    %c0_0 = arith.constant 0 : index
    %0 = vector.load %arg1[%c0, %c0_0] : memref<64x4xf32, #tpu.memory_space<vmem>>, vector<64x4xf32>
    %c0_1 = arith.constant 0 : index
    %c0_2 = arith.constant 0 : index
    %1 = vector.load %arg2[%c0_1, %c0_2] : memref<4x6xf32, #tpu.memory_space<vmem>>, vector<4x6xf32>
    %cst = arith.constant dense<0.000000e+00> : vector<64x6xf32>
    %2 = tpu.matmul %0, %1, %cst {dimension_numbers = #tpu.dot_dimension_numbers<[1], [0], [0], [1], [0, 0, 1, 1], [], []>} : vector<64x4xf32>, vector<4x6xf32>, vector<64x6xf32> -> vector<64x6xf32>
    %c0_3 = arith.constant 0 : index
    %c0_4 = arith.constant 0 : index
    %3 = vector.load %arg3[%c0_3, %c0_4] : memref<1x6xf32, #tpu.memory_space<vmem>>, vector<1x6xf32>
    %4 = vector.broadcast %3 : vector<1x6xf32> to vector<64x6xf32>
    %5 = arith.addf %2, %4 : vector<64x6xf32>
    %c0_5 = arith.constant 0 : index
    %c0_6 = arith.constant 0 : index
    %6 = vector.load %arg4[%c0_5, %c0_6] : memref<64x6xf32, #tpu.memory_space<vmem>>, vector<64x6xf32>
    tpu.vector_store %arg4[%c0_5, %c0_6], %5 {strides = array<i32>} : memref<64x6xf32, #tpu.memory_space<vmem>>, vector<64x6xf32>,
    return
  }
  func.func @transform_0(%arg0: i32) -> (i32, i32) {
    %c0_i32 = arith.constant 0 : i32
    %c0_i32_0 = arith.constant 0 : i32
    return %arg0, %c0_i32 : i32, i32
  }
  func.func @transform_1(%arg0: i32) -> (i32, i32) {
    %c0_i32 = arith.constant 0 : i32
    %c0_i32_0 = arith.constant 0 : i32
    %c0_i32_1 = arith.constant 0 : i32
    return %c0_i32, %c0_i32_0 : i32, i32
  }
  func.func @transform_2(%arg0: i32) -> (i32, i32) {
    %c0_i32 = arith.constant 0 : i32
    %c0_i32_0 = arith.constant 0 : i32
    %c0_i32_1 = arith.constant 0 : i32
    return %c0_i32, %c0_i32_0 : i32, i32
  }
  func.func @transform_3(%arg0: i32) -> (i32, i32) {
    %c0_i32 = arith.constant 0 : i32
    %c0_i32_0 = arith.constant 0 : i32
    return %arg0, %c0_i32 : i32, i32
  }
}

module attributes {stable_mosaic.version = 11 : i64} {
  func.func @_attention_kernel(%arg0: i32, %arg1: i32, %arg2: memref<1x32x2xf32, #tpu.memory_space<vmem>>, %arg3: memref<1x16x2xf32, #tpu.memory_space<vmem>>, %arg4: memref<1x16x2xf32, #tpu.memory_space<vmem>>, %arg5: memref<1x32x2xf32, #tpu.memory_space<vmem>>) attributes {dimension_semantics = [#tpu.dimension_semantics<parallel>, #tpu.dimension_semantics<parallel>], iteration_bounds = array<i64: 2, 2>, scalar_prefetch = 0 : i64, scratch_operands = 0 : i64, tpu.core_type = #tpu.core_type<tc>, window_params = [{transform_indices = @transform_0, window_bounds = array<i64: 1, 32, 2>}, {transform_indices = @transform_1, window_bounds = array<i64: 1, 16, 2>}, {transform_indices = @transform_2, window_bounds = array<i64: 1, 16, 2>}, {transform_indices = @transform_3, window_bounds = array<i64: 1, 32, 2>}]} {
    %c0 = arith.constant 0 : index
    %c0_0 = arith.constant 0 : index
    %c0_1 = arith.constant 0 : index
    %0 = vector.load %arg2[%c0, %c0_0, %c0_1] : memref<1x32x2xf32, #tpu.memory_space<vmem>>, vector<1x32x2xf32>
    %1 = vector.shape_cast %0 : vector<1x32x2xf32> to vector<32x2xf32>
    %c0_2 = arith.constant 0 : index
    %c0_3 = arith.constant 0 : index
    %c0_4 = arith.constant 0 : index
    %2 = vector.load %arg3[%c0_2, %c0_3, %c0_4] : memref<1x16x2xf32, #tpu.memory_space<vmem>>, vector<1x16x2xf32>
    %3 = vector.shape_cast %2 : vector<1x16x2xf32> to vector<16x2xf32>
    %c0_5 = arith.constant 0 : index
    %c0_6 = arith.constant 0 : index
    %c0_7 = arith.constant 0 : index
    %4 = vector.load %arg4[%c0_5, %c0_6, %c0_7] : memref<1x16x2xf32, #tpu.memory_space<vmem>>, vector<1x16x2xf32>
    %5 = vector.shape_cast %4 : vector<1x16x2xf32> to vector<16x2xf32>
    "tpu.trace_start"() <{level = 10 : i32, message = "qc,kc->qk"}> : () -> ()
    %cst = arith.constant dense<0.000000e+00> : vector<32x16xf32>
    %6 = tpu.matmul %1, %3, %cst {dimension_numbers = #tpu.dot_dimension_numbers<[1], [1], [0], [0], [0, 0, 1, 0], [], []>} : vector<32x2xf32>, vector<16x2xf32>, vector<32x16xf32> -> vector<32x16xf32>
    "tpu.trace_stop"() : () -> ()
    %cst_8 = arith.constant dense<0xFF800000> : vector<32xf32>
    %7 = vector.multi_reduction <maximumf>, %6, %cst_8 [1] : vector<32x16xf32> to vector<32xf32>
    %8 = vector.shape_cast %7 : vector<32xf32> to vector<32x1xf32>
    %9 = vector.broadcast %8 : vector<32x1xf32> to vector<32x16xf32>
    %10 = arith.subf %6, %9 : vector<32x16xf32>
    %11 = math.exp %10 : vector<32x16xf32>
    %cst_9 = arith.constant dense<0.000000e+00> : vector<32xf32>
    %12 = vector.multi_reduction <add>, %11, %cst_9 [1] : vector<32x16xf32> to vector<32xf32>
    %13 = vector.shape_cast %12 : vector<32xf32> to vector<32x1xf32>
    "tpu.trace_start"() <{level = 10 : i32, message = "qk,kc->qc"}> : () -> ()
    %cst_10 = arith.constant dense<0.000000e+00> : vector<32x2xf32>
    %14 = tpu.matmul %11, %5, %cst_10 {dimension_numbers = #tpu.dot_dimension_numbers<[1], [0], [0], [1], [0, 0, 1, 1], [], []>} : vector<32x16xf32>, vector<16x2xf32>, vector<32x2xf32> -> vector<32x2xf32>
    "tpu.trace_stop"() : () -> ()
    %15 = tpu.reciprocal %13 {approx = true} : vector<32x1xf32> -> vector<32x1xf32>
    %16 = arith.mulf %13, %15 : vector<32x1xf32>
    %cst_11 = arith.constant 2.000000e+00 : f32
    %17 = vector.broadcast %cst_11 : f32 to vector<32x1xf32>
    %18 = arith.subf %17, %16 : vector<32x1xf32>
    %19 = arith.mulf %15, %18 : vector<32x1xf32>
    %20 = vector.broadcast %19 : vector<32x1xf32> to vector<32x2xf32>
    %21 = arith.mulf %14, %20 : vector<32x2xf32>
    %c0_12 = arith.constant 0 : index
    %c0_13 = arith.constant 0 : index
    %c0_14 = arith.constant 0 : index
    %22 = vector.load %arg5[%c0_12, %c0_13, %c0_14] : memref<1x32x2xf32, #tpu.memory_space<vmem>>, vector<1x32x2xf32>
    %23 = vector.shape_cast %22 : vector<1x32x2xf32> to vector<32x2xf32>
    %24 = vector.shape_cast %21 : vector<32x2xf32> to vector<1x32x2xf32>
    tpu.vector_store %arg5[%c0_12, %c0_13, %c0_14], %24 {strides = array<i32>} : memref<1x32x2xf32, #tpu.memory_space<vmem>>, vector<1x32x2xf32>,
    return
  }
  func.func @transform_0(%arg0: i32, %arg1: i32) -> (i32, i32, i32) {
    %c0_i32 = arith.constant 0 : i32
    %c0_i32_0 = arith.constant 0 : i32
    return %arg0, %arg1, %c0_i32 : i32, i32, i32
  }
  func.func @transform_1(%arg0: i32, %arg1: i32) -> (i32, i32, i32) {
    %c0_i32 = arith.constant 0 : i32
    %c0_i32_0 = arith.constant 0 : i32
    %c0_i32_1 = arith.constant 0 : i32
    return %arg0, %c0_i32, %c0_i32_0 : i32, i32, i32
  }
  func.func @transform_2(%arg0: i32, %arg1: i32) -> (i32, i32, i32) {
    %c0_i32 = arith.constant 0 : i32
    %c0_i32_0 = arith.constant 0 : i32
    %c0_i32_1 = arith.constant 0 : i32
    return %arg0, %c0_i32, %c0_i32_0 : i32, i32, i32
  }
  func.func @transform_3(%arg0: i32, %arg1: i32) -> (i32, i32, i32) {
    %c0_i32 = arith.constant 0 : i32
    %c0_i32_0 = arith.constant 0 : i32
    return %arg0, %arg1, %c0_i32 : i32, i32, i32
  }
}

module attributes {stable_mosaic.version = 11 : i64} {
  func.func @_conv3x3_bn_res_kernel(%arg0: i32, %arg1: i32, %arg2: memref<1x18x18x2xf32, #tpu.memory_space<vmem>>, %arg3: memref<18x4xf32, #tpu.memory_space<vmem>>, %arg4: memref<1x4xf32, #tpu.memory_space<vmem>>, %arg5: memref<1x8x16x4xf32, #tpu.memory_space<vmem>>, %arg6: memref<1x8x16x4xf32, #tpu.memory_space<vmem>>) attributes {dimension_semantics = [#tpu.dimension_semantics<parallel>, #tpu.dimension_semantics<parallel>], iteration_bounds = array<i64: 2, 2>, scalar_prefetch = 0 : i64, scratch_operands = 0 : i64, tpu.core_type = #tpu.core_type<tc>, window_params = [{transform_indices = @transform_0, window_bounds = array<i64: 1, 18, 18, 2>}, {pipeline_mode = #tpu.pipeline_mode<synchronous>, transform_indices = @transform_1, window_bounds = array<i64: 18, 4>}, {pipeline_mode = #tpu.pipeline_mode<synchronous>, transform_indices = @transform_2, window_bounds = array<i64: 1, 4>}, {transform_indices = @transform_3, window_bounds = array<i64: 1, 8, 16, 4>}, {transform_indices = @transform_4, window_bounds = array<i64: 1, 8, 16, 4>}]} {
    %c8_i32 = arith.constant 8 : i32
    %0 = arith.muli %arg1, %c8_i32 : i32
    %1 = tpu.assume_multiple %0, 8 : i32
    %c0 = arith.constant 0 : index
    %2 = arith.index_cast %1 : i32 to index
    %c0_0 = arith.constant 0 : index
    %c0_1 = arith.constant 0 : index
    %3 = vector.load %arg2[%c0, %2, %c0_0, %c0_1] : memref<1x18x18x2xf32, #tpu.memory_space<vmem>>, vector<1x10x18x2xf32>
    %4 = vector.shape_cast %3 : vector<1x10x18x2xf32> to vector<10x18x2xf32>
    %5 = vector.extract_strided_slice %4 {offsets = [0, 0, 0], sizes = [8, 16, 2], strides = [1, 1, 1]} : vector<10x18x2xf32> to vector<8x16x2xf32>
    %6 = vector.extract_strided_slice %4 {offsets = [0, 1, 0], sizes = [8, 16, 2], strides = [1, 1, 1]} : vector<10x18x2xf32> to vector<8x16x2xf32>
    %7 = vector.extract_strided_slice %4 {offsets = [0, 2, 0], sizes = [8, 16, 2], strides = [1, 1, 1]} : vector<10x18x2xf32> to vector<8x16x2xf32>
    %8 = vector.extract_strided_slice %4 {offsets = [1, 0, 0], sizes = [8, 16, 2], strides = [1, 1, 1]} : vector<10x18x2xf32> to vector<8x16x2xf32>
    %9 = vector.extract_strided_slice %4 {offsets = [1, 1, 0], sizes = [8, 16, 2], strides = [1, 1, 1]} : vector<10x18x2xf32> to vector<8x16x2xf32>
    %10 = vector.extract_strided_slice %4 {offsets = [1, 2, 0], sizes = [8, 16, 2], strides = [1, 1, 1]} : vector<10x18x2xf32> to vector<8x16x2xf32>
    %11 = vector.extract_strided_slice %4 {offsets = [2, 0, 0], sizes = [8, 16, 2], strides = [1, 1, 1]} : vector<10x18x2xf32> to vector<8x16x2xf32>
    %12 = vector.extract_strided_slice %4 {offsets = [2, 1, 0], sizes = [8, 16, 2], strides = [1, 1, 1]} : vector<10x18x2xf32> to vector<8x16x2xf32>
    %13 = vector.extract_strided_slice %4 {offsets = [2, 2, 0], sizes = [8, 16, 2], strides = [1, 1, 1]} : vector<10x18x2xf32> to vector<8x16x2xf32>
    %14 = tpu.concatenate %5, %6, %7, %8, %9, %10, %11, %12, %13 in 2 : vector<8x16x2xf32>, vector<8x16x2xf32>, vector<8x16x2xf32>, vector<8x16x2xf32>, vector<8x16x2xf32>, vector<8x16x2xf32>, vector<8x16x2xf32>, vector<8x16x2xf32>, vector<8x16x2xf32> -> vector<8x16x18xf32>
    %15 = vector.shape_cast %14 : vector<8x16x18xf32> to vector<128x18xf32>
    %c0_2 = arith.constant 0 : index
    %c0_3 = arith.constant 0 : index
    %16 = vector.load %arg3[%c0_2, %c0_3] : memref<18x4xf32, #tpu.memory_space<vmem>>, vector<18x4xf32>
    %cst = arith.constant dense<0.000000e+00> : vector<128x4xf32>
    %17 = tpu.matmul %15, %16, %cst {dimension_numbers = #tpu.dot_dimension_numbers<[1], [0], [0], [1], [0, 0, 1, 1], [], []>} : vector<128x18xf32>, vector<18x4xf32>, vector<128x4xf32> -> vector<128x4xf32>
    %c0_4 = arith.constant 0 : index
    %c0_5 = arith.constant 0 : index
    %18 = vector.load %arg4[%c0_4, %c0_5] : memref<1x4xf32, #tpu.memory_space<vmem>>, vector<1x4xf32>
    %19 = vector.broadcast %18 : vector<1x4xf32> to vector<128x4xf32>
    %20 = arith.addf %17, %19 : vector<128x4xf32>
    %c0_6 = arith.constant 0 : index
    %c0_7 = arith.constant 0 : index
    %c0_8 = arith.constant 0 : index
    %c0_9 = arith.constant 0 : index
    %21 = vector.load %arg5[%c0_6, %c0_7, %c0_8, %c0_9] : memref<1x8x16x4xf32, #tpu.memory_space<vmem>>, vector<1x8x16x4xf32>
    %22 = vector.shape_cast %21 : vector<1x8x16x4xf32> to vector<8x16x4xf32>
    %23 = vector.shape_cast %22 : vector<8x16x4xf32> to vector<128x4xf32>
    %24 = arith.addf %20, %23 : vector<128x4xf32>
    %25 = vector.shape_cast %24 : vector<128x4xf32> to vector<8x16x4xf32>
    %c0_10 = arith.constant 0 : index
    %c0_11 = arith.constant 0 : index
    %c0_12 = arith.constant 0 : index
    %c0_13 = arith.constant 0 : index
    %26 = vector.load %arg6[%c0_10, %c0_11, %c0_12, %c0_13] : memref<1x8x16x4xf32, #tpu.memory_space<vmem>>, vector<1x8x16x4xf32>
    %27 = vector.shape_cast %26 : vector<1x8x16x4xf32> to vector<8x16x4xf32>
    %28 = vector.shape_cast %25 : vector<8x16x4xf32> to vector<1x8x16x4xf32>
    tpu.vector_store %arg6[%c0_10, %c0_11, %c0_12, %c0_13], %28 {strides = array<i32>} : memref<1x8x16x4xf32, #tpu.memory_space<vmem>>, vector<1x8x16x4xf32>,
    return
  }
  func.func @transform_0(%arg0: i32, %arg1: i32) -> (i32, i32, i32, i32) {
    %c0_i32 = arith.constant 0 : i32
    %c0_i32_0 = arith.constant 0 : i32
    %c0_i32_1 = arith.constant 0 : i32
    %c0_i32_2 = arith.constant 0 : i32
    return %arg0, %c0_i32, %c0_i32_0, %c0_i32_1 : i32, i32, i32, i32
  }
  func.func @transform_1(%arg0: i32, %arg1: i32) -> (i32, i32) {
    %c0_i32 = arith.constant 0 : i32
    %c0_i32_0 = arith.constant 0 : i32
    %c0_i32_1 = arith.constant 0 : i32
    return %c0_i32, %c0_i32_0 : i32, i32
  }
  func.func @transform_2(%arg0: i32, %arg1: i32) -> (i32, i32) {
    %c0_i32 = arith.constant 0 : i32
    %c0_i32_0 = arith.constant 0 : i32
    %c0_i32_1 = arith.constant 0 : i32
    return %c0_i32, %c0_i32_0 : i32, i32
  }
  func.func @transform_3(%arg0: i32, %arg1: i32) -> (i32, i32, i32, i32) {
    %c0_i32 = arith.constant 0 : i32
    %c0_i32_0 = arith.constant 0 : i32
    %c0_i32_1 = arith.constant 0 : i32
    return %arg0, %arg1, %c0_i32, %c0_i32_0 : i32, i32, i32, i32
  }
  func.func @transform_4(%arg0: i32, %arg1: i32) -> (i32, i32, i32, i32) {
    %c0_i32 = arith.constant 0 : i32
    %c0_i32_0 = arith.constant 0 : i32
    %c0_i32_1 = arith.constant 0 : i32
    return %arg0, %arg1, %c0_i32, %c0_i32_0 : i32, i32, i32, i32
  }
}

</mosaic_0001>

<llo_original>
// kernel: spatial_attention_wh_forward.3
$region0: #{spatial_attention_wh_forward.3}
  #allocation0 [shape = 'u32[]', space=smem, size = 0x4, offset = 0x4, fixed_abs, tag = 'smem constant byte address 0x4 - core index']
  #allocation1 [shape = 'u32[144,128]{1,0:T(1,128)}', space=vmem, size = 0x12000, scoped, tag = 'internal scratch']
  %s0 = inlined_call_operand.vmem [shape: f32[128,4], index: 0, kind: input, shape index: {}]
  %s1 = inlined_call_operand.vmem [shape: f32[4,6], index: 1, kind: input, shape index: {}]
  %s2 = inlined_call_operand.vmem [shape: f32[1,6], index: 2, kind: input, shape index: {}]
  %s3 = inlined_call_operand.vmem [shape: f32[128,6], index: 3, kind: output, shape index: {}]
  %s4 = sld [smem:[#allocation0]]
  $region45: #{spatial_attention_wh_forward.3} parent=0
    _
  %s6 = ssub.s32 1, %s4
  %s7 = scalar_select 0, %s6, %s4
  loop: start=0, step=1, limit=4
  $region2: #{spatial_attention_wh_forward.3} parent=0 // loop_pre_header
    _
  $region3: #{spatial_attention_wh_forward.3} parent=0 // loop_header
    %s9 = sphi 0, %s13
    %p10 = scmp.ge.s32.totalorder %s9, 4
    %s19 = sphi 0, %s21
    %s22 = sphi 0, %s19
    %s23 = sphi 0, %s22
    %s39 = sphi 0, %s23
    %s43 = sphi 0, %s43
    %s45 = sphi 0, %s43
    %s46 = sphi 0, %s45
    %s60 = sphi 0, %s46
    %s64 = sphi 0, %s64
    %s66 = sphi 0, %s64
    %s67 = sphi 0, %s66
    %s81 = sphi 0, %s67
    %s87 = sphi 0, %s89
    %s90 = sphi 0, %s87
    %s91 = sphi 0, %s90
    %s107 = sphi 0, %s91
  $region4: #{spatial_attention_wh_forward.3} parent=0 // loop_header_branch
    %12 = sbr.rel (%p10) target = $region8
  $region5: #{spatial_attention_wh_forward.3} parent=0 // loop_body
    %s14 = ssub.s32 %s9, 1
    %s15 = ssub.s32 %s9, 2
    %s16 = sadd.s32 %s9, 1
    %s17 = ssub.s32 %s9, %s16
    %p18 = scmp.eq.s32.totalorder %s17, 0
    %s20 = sadd.s32 %s19, 1
    %s21 = scalar_select %p18, %s19, %s20
    %p24 = pneg %p18
    %p25 = scmp.eq.s32.totalorder %s9, 1
    %p26 = por %p24, %p25
    %p27 = scmp.ne.s32.totalorder %s19, %s22
    %p28 = scmp.eq.s32.totalorder %s9, 0
    %p29 = por %p27, %p28
    %p30 = scmp.ne.s32.totalorder %s19, %s22
    %p31 = scmp.eq.s32.totalorder %s14, 1
    %p32 = por %p30, %p31
    %p33 = scmp.ne.s32.totalorder %s22, %s23
    %p34 = scmp.eq.s32.totalorder %s14, 0
    %p35 = por %p33, %p34
    %p36 = scmp.ne.s32.totalorder %s22, %s23
    %p37 = scmp.eq.s32.totalorder %s15, 1
    %p38 = por %p36, %p37
    %p40 = scmp.ne.s32.totalorder %s23, %s39
    %p41 = scmp.eq.s32.totalorder %s15, 0
    %p42 = por %p40, %p41
    %s44 = sadd.s32 %s43, 1
    %p47 = scmp.eq.s32.totalorder %s9, 1
    %p48 = scmp.ne.s32.totalorder %s43, %s45
    %p49 = scmp.eq.s32.totalorder %s9, 0
    %p50 = por %p48, %p49
    %p51 = scmp.ne.s32.totalorder %s43, %s45
    %p52 = scmp.eq.s32.totalorder %s14, 1
    %p53 = por %p51, %p52
    %p54 = scmp.ne.s32.totalorder %s45, %s46
    %p55 = scmp.eq.s32.totalorder %s14, 0
    %p56 = por %p54, %p55
    %p57 = scmp.ne.s32.totalorder %s45, %s46
    %p58 = scmp.eq.s32.totalorder %s15, 1
    %p59 = por %p57, %p58
    %p61 = scmp.ne.s32.totalorder %s46, %s60
    %p62 = scmp.eq.s32.totalorder %s15, 0
    %p63 = por %p61, %p62
    %s65 = sadd.s32 %s64, 1
    %p68 = scmp.eq.s32.totalorder %s9, 1
    %p69 = scmp.ne.s32.totalorder %s64, %s66
    %p70 = scmp.eq.s32.totalorder %s9, 0
    %p71 = por %p69, %p70
    %p72 = scmp.ne.s32.totalorder %s64, %s66
    %p73 = scmp.eq.s32.totalorder %s14, 1
    %p74 = por %p72, %p73
    %p75 = scmp.ne.s32.totalorder %s66, %s67
    %p76 = scmp.eq.s32.totalorder %s14, 0
    %p77 = por %p75, %p76
    %p78 = scmp.ne.s32.totalorder %s66, %s67
    %p79 = scmp.eq.s32.totalorder %s15, 1
    %p80 = por %p78, %p79
    %p82 = scmp.ne.s32.totalorder %s67, %s81
    %p83 = scmp.eq.s32.totalorder %s15, 0
    %p84 = por %p82, %p83
    %s85 = ssub.s32 %s9, %s16
    %p86 = scmp.eq.s32.totalorder %s85, 0
    %s88 = sadd.s32 %s87, 1
    %s89 = scalar_select %p86, %s87, %s88
    %p92 = pneg %p86
    %p93 = scmp.eq.s32.totalorder %s9, 1
    %p94 = por %p92, %p93
    %p95 = scmp.ne.s32.totalorder %s87, %s90
    %p96 = scmp.eq.s32.totalorder %s9, 0
    %p97 = por %p95, %p96
    %p98 = scmp.ne.s32.totalorder %s87, %s90
    %p99 = scmp.eq.s32.totalorder %s14, 1
    %p100 = por %p98, %p99
    %p101 = scmp.ne.s32.totalorder %s90, %s91
    %p102 = scmp.eq.s32.totalorder %s14, 0
    %p103 = por %p101, %p102
    %p104 = scmp.ne.s32.totalorder %s90, %s91
    %p105 = scmp.eq.s32.totalorder %s15, 1
    %p106 = por %p104, %p105
    %p108 = scmp.ne.s32.totalorder %s91, %s107
    %p109 = scmp.eq.s32.totalorder %s15, 0
    %p110 = por %p108, %p109
    %p111 = scmp.le.s32.totalorder 1, %s9
    %p112 = scmp.lt.s32.totalorder %s9, 3
    %p113 = pnand %p111, %p112
    %p114 = pneg %p113
    // Predicated region
    $region9: #{spatial_attention_wh_forward.3} parent=5 // pred_check
      _
    $region10: #{spatial_attention_wh_forward.3} parent=5 // pred_check_branch
      %116 = sbr.rel (%p113) target = $region12
    $region11: #{spatial_attention_wh_forward.3} parent=5 // pred_region
      %s117 = ssub.s32 %s9, 1
      // Predicated region
      $region13: #{spatial_attention_wh_forward.3} parent=11 // pred_check
        %p118 = pneg %p56
      $region14: #{spatial_attention_wh_forward.3} parent=11 // pred_check_branch
        %120 = sbr.rel (%p118) target = $region16
      $region15: #{spatial_attention_wh_forward.3} parent=11 // pred_region
        _
      $region16: #{spatial_attention_wh_forward.3} parent=11 // pred_fallthru
        _
      // Predicated region
      $region17: #{spatial_attention_wh_forward.3} parent=11 // pred_check
        %p121 = pneg %p77
      $region18: #{spatial_attention_wh_forward.3} parent=11 // pred_check_branch
        %123 = sbr.rel (%p121) target = $region20
      $region19: #{spatial_attention_wh_forward.3} parent=11 // pred_region
        _
      $region20: #{spatial_attention_wh_forward.3} parent=11 // pred_fallthru
        _
    $region12: #{spatial_attention_wh_forward.3} parent=5 // pred_fallthru
      _
    %p124 = scmp.lt.s32.totalorder %s9, 2
    // Predicated region
    $region21: #{spatial_attention_wh_forward.3} parent=5 // pred_check
      %p125 = pneg %p124
    $region22: #{spatial_attention_wh_forward.3} parent=5 // pred_check_branch
      %127 = sbr.rel (%p125) target = $region24
    $region23: #{spatial_attention_wh_forward.3} parent=5 // pred_region
      // Predicated region
      $region25: #{spatial_attention_wh_forward.3} parent=23 // pred_check
        %p128 = pneg %p29
      $region26: #{spatial_attention_wh_forward.3} parent=23 // pred_check_branch
        %130 = sbr.rel (%p128) target = $region28
      $region27: #{spatial_attention_wh_forward.3} parent=23 // pred_region
        %s131 = smul.u32 8, %s9
        %p132 = scmp.lt.s32.totalorder %s131, 15
        %s133 = scalar_select %p132, %s131, 15
        %s134 = smul.addr %s133, 8
        %s135 = scalar_lea.vmem %s0, %s134
        %s136 = smul.u32 8, %s9
      $region28: #{spatial_attention_wh_forward.3} parent=23 // pred_fallthru
        _
    $region24: #{spatial_attention_wh_forward.3} parent=5 // pred_fallthru
      _
    %p137 = scmp.le.s32.totalorder 1, %s9
    %p138 = scmp.lt.s32.totalorder %s9, 3
    %p139 = pnand %p137, %p138
    %p140 = pneg %p139
    // Predicated region
    $region29: #{spatial_attention_wh_forward.3} parent=5 // pred_check
      _
    $region30: #{spatial_attention_wh_forward.3} parent=5 // pred_check_branch
      %142 = sbr.rel (%p139) target = $region32
    $region31: #{spatial_attention_wh_forward.3} parent=5 // pred_region
      %s143 = ssub.s32 %s9, 1
      %s144 = smul.u32 8, %s14
      %p145 = scmp.lt.s32.totalorder %s144, 15
      %s146 = scalar_select %p145, %s144, 15
      %s147 = smul.addr %s146, 8
      %s148 = scalar_lea.vmem %s0, %s147
      %p149 = pneg %p35
      %p150 = pneg %p32
      %p151 = pneg %p56
      %p152 = pneg %p53
      %p153 = pneg %p77
      %p154 = pneg %p74
      %p155 = pneg %p103
      %p156 = pneg %p100
      %s157 = smul.u32 8, %s14
      %p158 = scmp.lt.s32.totalorder %s157, 15
      %s159 = scalar_select %p158, %s157, 15
      %s160 = smul.addr %s159, 8
      %s161 = scalar_lea.vmem %s3, %s160
      %s162 = smul.u32 8, %s14
      %p163 = scmp.lt.s32.totalorder %s162, 15
      %s164 = scalar_select %p163, %s162, 15
      %s165 = smul.addr %s164, 8
      %s166 = scalar_lea.vmem %s0, %s165
      %s167 = smul.u32 8, %s14
      %s168 = smul.u32 8, %s14
      %p169 = scmp.lt.s32.totalorder %s168, 15
      %s170 = scalar_select %p169, %s168, 15
      %s171 = smul.addr %s170, 8
      %s172 = scalar_lea.vmem %s3, %s171
      %s173 = smul.u32 8, %s14
      %v174 = vld [vmem:[%s166] sm:$0xff]
      %v175 = vld [vmem:[%s166 + $0x8] sm:$0xff]
      %v176 = vld [vmem:[%s166 + $0x10] sm:$0xff]
      %v177 = vld [vmem:[%s166 + $0x18] sm:$0xff]
      %v178 = vld [vmem:[%s166 + $0x20] sm:$0xff]
      %v179 = vld [vmem:[%s166 + $0x28] sm:$0xff]
      %v180 = vld [vmem:[%s166 + $0x30] sm:$0xff]
      %v181 = vld [vmem:[%s166 + $0x38] sm:$0xff]
      %v182 = vld [vmem:[%s1] sm:$0xf]
      %v183 = vld [vmem:[%s2] sm:$0x1]
      %v185 = vlaneseq
      %v186 = vshrl.u32 %v185, 7
      %v187 = vsub.s32 0, %v186
      %v188 = vrot.slane %v183, %v187
      %vm190 = vcmask 31744
      %v192 = vsel %vm190, %v174, 0
      %v195 = vsel %vm190, %v175, 0
      %v198 = vsel %vm190, %v176, 0
      %v201 = vsel %vm190, %v177, 0
      %v204 = vsel %vm190, %v178, 0
      %v207 = vsel %vm190, %v179, 0
      %v210 = vsel %vm190, %v180, 0
      %v213 = vsel %vm190, %v181, 0
      %vm215 = vcmask 1043456
      %v217 = vsel %vm215, %v182, 0
      %219 = vmatprep.subr.mxu0 0.0
      %220 = vmatpush1.msra.mxu0 0.0
      %221 = vmatprep.subr.mxu0 0.0
      %222 = vmatpush1.msra.mxu0 0.0
      %223 = vmatprep.subr.mxu0 0.0
      %224 = vmatpush1.msra.mxu0 0.0
      %225 = vmatprep.subr.mxu0 0.0
      %226 = vmatpush1.msra.mxu0 0.0
      %227 = vmatprep.subr.mxu0 0.0
      %228 = vmatpush1.msra.mxu0 0.0
      %229 = vmatprep.subr.mxu0 0.0
      %230 = vmatpush1.msra.mxu0 0.0
      %231 = vmatprep.subr.mxu0 0.0
      %232 = vmatpush1.msra.mxu0 0.0
      %233 = vmatprep.subr.mxu0 0.0
      %234 = vmatpush1.msra.mxu0 0.0
      %235 = vmatprep.subr.mxu0 0.0
      %236 = vmatpush1.msra.mxu0 0.0
      %237 = vmatprep.subr.mxu0 0.0
      %238 = vmatpush1.msra.mxu0 0.0
      %239 = vmatprep.subr.mxu0 0.0
      %240 = vmatpush1.msra.mxu0 0.0
      %241 = vmatprep.subr.mxu0 0.0
      %242 = vmatpush1.msra.mxu0 0.0
      %243 = vmatprep.subr.mxu0 0.0
      %244 = vmatpush1.msra.mxu0 0.0
      %245 = vmatprep.subr.mxu0 0.0
      %246 = vmatpush1.msra.mxu0 0.0
      %247 = vmatprep.subr.mxu0 0.0
      %248 = vmatpush1.msra.mxu0 0.0
      %249 = vmatprep.subr.mxu0 0.0
      %250 = vmatpush1.msra.mxu0 %v217
      %251 = vmatprep.subr.mxu0 0.0
      %252 = vmatpush2.msra.mxu0 0.0
      %253 = vmatprep.subr.mxu0 0.0
      %254 = vmatpush2.msra.mxu0 0.0
      %255 = vmatprep.subr.mxu0 0.0
      %256 = vmatpush2.msra.mxu0 0.0
      %257 = vmatprep.subr.mxu0 0.0
      %258 = vmatpush2.msra.mxu0 0.0
      %259 = vmatprep.subr.mxu0 0.0
      %260 = vmatpush2.msra.mxu0 0.0
      %261 = vmatprep.subr.mxu0 0.0
      %262 = vmatpush2.msra.mxu0 0.0
      %263 = vmatprep.subr.mxu0 0.0
      %264 = vmatpush2.msra.mxu0 0.0
      %265 = vmatprep.subr.mxu0 0.0
      %266 = vmatpush2.msra.mxu0 0.0
      %267 = vmatprep.subr.mxu0 0.0
      %268 = vmatpush2.msra.mxu0 0.0
      %269 = vmatprep.subr.mxu0 0.0
      %270 = vmatpush2.msra.mxu0 0.0
      %271 = vmatprep.subr.mxu0 0.0
      %272 = vmatpush2.msra.mxu0 0.0
      %273 = vmatprep.subr.mxu0 0.0
      %274 = vmatpush2.msra.mxu0 0.0
      %275 = vmatprep.subr.mxu0 0.0
      %276 = vmatpush2.msra.mxu0 0.0
      %277 = vmatprep.subr.mxu0 0.0
      %278 = vmatpush2.msra.mxu0 0.0
      %279 = vmatprep.subr.mxu0 0.0
      %280 = vmatpush2.msra.mxu0 0.0
      %281 = vmatprep.subr.mxu0 0.0
      %282 = vmatpush2.msra.mxu0 0.0
      %283 = vmatprep.mubr.f32.mxu0 0.0
      %284 = vmatmul.mubr.f32.gmra.mxu0 %v192
      %v285 = vpop.f32.mrf.mxu0
      %v286 = vadd.f32 %v188, %v285
      %v287 = vpop.f32.mrf.mxu0
      %288 = vmatprep.mubr.f32.mxu0 0.0
      %289 = vmatmul.mubr.f32.gmra.mxu0 %v195
      %v290 = vpop.f32.mrf.mxu0
      %v291 = vadd.f32 %v188, %v290
      %v292 = vpop.f32.mrf.mxu0
      %293 = vmatprep.mubr.f32.mxu0 0.0
      %294 = vmatmul.mubr.f32.gmra.mxu0 %v198
      %v295 = vpop.f32.mrf.mxu0
      %v296 = vadd.f32 %v188, %v295
      %v297 = vpop.f32.mrf.mxu0
      %298 = vmatprep.mubr.f32.mxu0 0.0
      %299 = vmatmul.mubr.f32.gmra.mxu0 %v201
      %v300 = vpop.f32.mrf.mxu0
      %v301 = vadd.f32 %v188, %v300
      %v302 = vpop.f32.mrf.mxu0
      %303 = vmatprep.mubr.f32.mxu0 0.0
      %304 = vmatmul.mubr.f32.gmra.mxu0 %v204
      %v305 = vpop.f32.mrf.mxu0
      %v306 = vadd.f32 %v188, %v305
      %v307 = vpop.f32.mrf.mxu0
      %308 = vmatprep.mubr.f32.mxu0 0.0
      %309 = vmatmul.mubr.f32.gmra.mxu0 %v207
      %v310 = vpop.f32.mrf.mxu0
      %v311 = vadd.f32 %v188, %v310
      %v312 = vpop.f32.mrf.mxu0
      %313 = vmatprep.mubr.f32.mxu0 0.0
      %314 = vmatmul.mubr.f32.gmra.mxu0 %v210
      %v315 = vpop.f32.mrf.mxu0
      %v316 = vadd.f32 %v188, %v315
      %v317 = vpop.f32.mrf.mxu0
      %318 = vmatprep.mubr.f32.mxu0 0.0
      %319 = vmatmul.mubr.f32.gmra.mxu0 %v213
      %v320 = vpop.f32.mrf.mxu0
      %v321 = vadd.f32 %v188, %v320
      %v322 = vpop.f32.mrf.mxu0
      %323 = vdwg.mxu0
      %vm324 = vcmask 48128
      %325 = vst.msk [vmem:[%s172] sm:$0xff] %vm324, %v286
      %326 = vst.msk [vmem:[%s172 + $0x8] sm:$0xff] %vm324, %v291
      %327 = vst.msk [vmem:[%s172 + $0x10] sm:$0xff] %vm324, %v296
      %328 = vst.msk [vmem:[%s172 + $0x18] sm:$0xff] %vm324, %v301
      %329 = vst.msk [vmem:[%s172 + $0x20] sm:$0xff] %vm324, %v306
      %330 = vst.msk [vmem:[%s172 + $0x28] sm:$0xff] %vm324, %v311
      %331 = vst.msk [vmem:[%s172 + $0x30] sm:$0xff] %vm324, %v316
      %332 = vst.msk [vmem:[%s172 + $0x38] sm:$0xff] %vm324, %v321
      %s333 = smul.u32 8, %s14
      %p334 = scmp.lt.s32.totalorder %s333, 15
      %s335 = scalar_select %p334, %s333, 15
      %s336 = smul.addr %s335, 8
      %s337 = scalar_lea.vmem %s3, %s336
      // Predicated region
      $region33: #{spatial_attention_wh_forward.3} parent=31 // pred_check
        %p338 = pneg %p100
      $region34: #{spatial_attention_wh_forward.3} parent=31 // pred_check_branch
        %340 = sbr.rel (%p338) target = $region36
      $region35: #{spatial_attention_wh_forward.3} parent=31 // pred_region
        %s341 = smul.u32 8, %s14
      $region36: #{spatial_attention_wh_forward.3} parent=31 // pred_fallthru
        _
    $region32: #{spatial_attention_wh_forward.3} parent=5 // pred_fallthru
      _
    %p342 = scmp.le.s32.totalorder 2, %s9
    // Predicated region
    $region37: #{spatial_attention_wh_forward.3} parent=5 // pred_check
      %p343 = pneg %p342
    $region38: #{spatial_attention_wh_forward.3} parent=5 // pred_check_branch
      %345 = sbr.rel (%p343) target = $region40
    $region39: #{spatial_attention_wh_forward.3} parent=5 // pred_region
      %s346 = ssub.s32 %s9, 2
      // Predicated region
      $region41: #{spatial_attention_wh_forward.3} parent=39 // pred_check
        %p347 = pneg %p106
      $region42: #{spatial_attention_wh_forward.3} parent=39 // pred_check_branch
        %349 = sbr.rel (%p347) target = $region44
      $region43: #{spatial_attention_wh_forward.3} parent=39 // pred_region
        %s350 = smul.u32 8, %s15
        %p351 = scmp.lt.s32.totalorder %s350, 15
        %s352 = scalar_select %p351, %s350, 15
        %s353 = smul.addr %s352, 8
        %s354 = scalar_lea.vmem %s3, %s353
      $region44: #{spatial_attention_wh_forward.3} parent=39 // pred_fallthru
        _
    $region40: #{spatial_attention_wh_forward.3} parent=5 // pred_fallthru
      _
  $region6: #{spatial_attention_wh_forward.3} parent=0 // loop_footer
    %s13 = sadd.s32 1, %s9
  $region7: #{spatial_attention_wh_forward.3} parent=0 // loop_footer_branch
    %8 = sbr.rel target = $region3
  $region8: #{spatial_attention_wh_forward.3} parent=0 // loop_exit
    _

// kernel: spatial_attention_wh_forward.4
$region0: #{spatial_attention_wh_forward.4}
  #allocation0 [shape = 'u32[]', space=smem, size = 0x4, offset = 0x4, fixed_abs, tag = 'smem constant byte address 0x4 - core index']
  #allocation1 [shape = 'u32[144,128]{1,0:T(1,128)}', space=vmem, size = 0x12000, scoped, tag = 'internal scratch']
  %s0 = inlined_call_operand.vmem [shape: f32[2,64,2], index: 0, kind: input, shape index: {}]
  %s1 = inlined_call_operand.vmem [shape: f32[2,16,2], index: 1, kind: input, shape index: {}]
  %s2 = inlined_call_operand.vmem [shape: f32[2,16,2], index: 2, kind: input, shape index: {}]
  %s3 = inlined_call_operand.vmem [shape: f32[2,64,2], index: 3, kind: output, shape index: {}]
  %s4 = sld [smem:[#allocation0]]
  $region45: #{spatial_attention_wh_forward.4} parent=0
    _
  %s6 = ssub.s32 1, %s4
  %s7 = scalar_select 0, %s6, %s4
  loop: start=0, step=1, limit=6
  $region2: #{spatial_attention_wh_forward.4} parent=0 // loop_pre_header
    _
  $region3: #{spatial_attention_wh_forward.4} parent=0 // loop_header
    %s9 = sphi 0, %s13
    %p10 = scmp.ge.s32.totalorder %s9, 6
    %s16 = sphi 0, %s28
    %s17 = sphi 0, %s24
    %s18 = sphi 0, %s16
    %s19 = sphi 0, %s17
    %s20 = sphi 0, %s18
    %s21 = sphi 0, %s19
    %s33 = sphi 0, %s35
    %s36 = sphi 0, %s33
    %s37 = sphi 0, %s36
    %s53 = sphi 0, %s37
    %s59 = sphi 0, %s61
    %s62 = sphi 0, %s59
    %s63 = sphi 0, %s62
    %s79 = sphi 0, %s63
    %s85 = sphi 0, %s87
    %s88 = sphi 0, %s85
    %s89 = sphi 0, %s88
    %s105 = sphi 0, %s89
    %s113 = sphi 0, %s115
    %s116 = sphi 0, %s113
    %s117 = sphi 0, %s116
    %s133 = sphi 0, %s117
  $region4: #{spatial_attention_wh_forward.4} parent=0 // loop_header_branch
    %12 = sbr.rel (%p10) target = $region8
  $region5: #{spatial_attention_wh_forward.4} parent=0 // loop_body
    %s14 = ssub.s32 %s9, 1
    %s15 = ssub.s32 %s9, 2
    %s22 = sadd.s32 1, %s17
    %p23 = scmp.ge.s32.totalorder %s22, 2
    %s24 = scalar_select %p23, 0, %s22
    %s25 = sadd.s32 1, %s16
    %s26 = scalar_select %p23, %s25, %s16
    %p27 = scmp.ge.s32.totalorder %s26, 2
    %s28 = scalar_select %p27, 0, %s26
    %s29 = ssub.s32 %s16, %s28
    %s30 = ssub.s32 %s17, %s24
    %s31 = sor.u32 %s29, %s30
    %p32 = scmp.eq.s32.totalorder %s31, 0
    %s34 = sadd.s32 %s33, 1
    %s35 = scalar_select %p32, %s33, %s34
    %p38 = pneg %p32
    %p39 = scmp.eq.s32.totalorder %s9, 3
    %p40 = por %p38, %p39
    %p41 = scmp.ne.s32.totalorder %s33, %s36
    %p42 = scmp.eq.s32.totalorder %s9, 0
    %p43 = por %p41, %p42
    %p44 = scmp.ne.s32.totalorder %s33, %s36
    %p45 = scmp.eq.s32.totalorder %s14, 3
    %p46 = por %p44, %p45
    %p47 = scmp.ne.s32.totalorder %s36, %s37
    %p48 = scmp.eq.s32.totalorder %s14, 0
    %p49 = por %p47, %p48
    %p50 = scmp.ne.s32.totalorder %s36, %s37
    %p51 = scmp.eq.s32.totalorder %s15, 3
    %p52 = por %p50, %p51
    %p54 = scmp.ne.s32.totalorder %s37, %s53
    %p55 = scmp.eq.s32.totalorder %s15, 0
    %p56 = por %p54, %p55
    %s57 = ssub.s32 %s16, %s28
    %p58 = scmp.eq.s32.totalorder %s57, 0
    %s60 = sadd.s32 %s59, 1
    %s61 = scalar_select %p58, %s59, %s60
    %p64 = pneg %p58
    %p65 = scmp.eq.s32.totalorder %s9, 3
    %p66 = por %p64, %p65
    %p67 = scmp.ne.s32.totalorder %s59, %s62
    %p68 = scmp.eq.s32.totalorder %s9, 0
    %p69 = por %p67, %p68
    %p70 = scmp.ne.s32.totalorder %s59, %s62
    %p71 = scmp.eq.s32.totalorder %s14, 3
    %p72 = por %p70, %p71
    %p73 = scmp.ne.s32.totalorder %s62, %s63
    %p74 = scmp.eq.s32.totalorder %s14, 0
    %p75 = por %p73, %p74
    %p76 = scmp.ne.s32.totalorder %s62, %s63
    %p77 = scmp.eq.s32.totalorder %s15, 3
    %p78 = por %p76, %p77
    %p80 = scmp.ne.s32.totalorder %s63, %s79
    %p81 = scmp.eq.s32.totalorder %s15, 0
    %p82 = por %p80, %p81
    %s83 = ssub.s32 %s16, %s28
    %p84 = scmp.eq.s32.totalorder %s83, 0
    %s86 = sadd.s32 %s85, 1
    %s87 = scalar_select %p84, %s85, %s86
    %p90 = pneg %p84
    %p91 = scmp.eq.s32.totalorder %s9, 3
    %p92 = por %p90, %p91
    %p93 = scmp.ne.s32.totalorder %s85, %s88
    %p94 = scmp.eq.s32.totalorder %s9, 0
    %p95 = por %p93, %p94
    %p96 = scmp.ne.s32.totalorder %s85, %s88
    %p97 = scmp.eq.s32.totalorder %s14, 3
    %p98 = por %p96, %p97
    %p99 = scmp.ne.s32.totalorder %s88, %s89
    %p100 = scmp.eq.s32.totalorder %s14, 0
    %p101 = por %p99, %p100
    %p102 = scmp.ne.s32.totalorder %s88, %s89
    %p103 = scmp.eq.s32.totalorder %s15, 3
    %p104 = por %p102, %p103
    %p106 = scmp.ne.s32.totalorder %s89, %s105
    %p107 = scmp.eq.s32.totalorder %s15, 0
    %p108 = por %p106, %p107
    %s109 = ssub.s32 %s16, %s28
    %s110 = ssub.s32 %s17, %s24
    %s111 = sor.u32 %s109, %s110
    %p112 = scmp.eq.s32.totalorder %s111, 0
    %s114 = sadd.s32 %s113, 1
    %s115 = scalar_select %p112, %s113, %s114
    %p118 = pneg %p112
    %p119 = scmp.eq.s32.totalorder %s9, 3
    %p120 = por %p118, %p119
    %p121 = scmp.ne.s32.totalorder %s113, %s116
    %p122 = scmp.eq.s32.totalorder %s9, 0
    %p123 = por %p121, %p122
    %p124 = scmp.ne.s32.totalorder %s113, %s116
    %p125 = scmp.eq.s32.totalorder %s14, 3
    %p126 = por %p124, %p125
    %p127 = scmp.ne.s32.totalorder %s116, %s117
    %p128 = scmp.eq.s32.totalorder %s14, 0
    %p129 = por %p127, %p128
    %p130 = scmp.ne.s32.totalorder %s116, %s117
    %p131 = scmp.eq.s32.totalorder %s15, 3
    %p132 = por %p130, %p131
    %p134 = scmp.ne.s32.totalorder %s117, %s133
    %p135 = scmp.eq.s32.totalorder %s15, 0
    %p136 = por %p134, %p135
    %p137 = scmp.le.s32.totalorder 1, %s9
    %p138 = scmp.lt.s32.totalorder %s9, 5
    %p139 = pnand %p137, %p138
    %p140 = pneg %p139
    // Predicated region
    $region9: #{spatial_attention_wh_forward.4} parent=5 // pred_check
      _
    $region10: #{spatial_attention_wh_forward.4} parent=5 // pred_check_branch
      %142 = sbr.rel (%p139) target = $region12
    $region11: #{spatial_attention_wh_forward.4} parent=5 // pred_region
      %s143 = ssub.s32 %s9, 1
    $region12: #{spatial_attention_wh_forward.4} parent=5 // pred_fallthru
      _
    %p144 = scmp.lt.s32.totalorder %s9, 4
    // Predicated region
    $region13: #{spatial_attention_wh_forward.4} parent=5 // pred_check
      %p145 = pneg %p144
    $region14: #{spatial_attention_wh_forward.4} parent=5 // pred_check_branch
      %147 = sbr.rel (%p145) target = $region16
    $region15: #{spatial_attention_wh_forward.4} parent=5 // pred_region
      // Predicated region
      $region17: #{spatial_attention_wh_forward.4} parent=15 // pred_check
        %p148 = pneg %p43
      $region18: #{spatial_attention_wh_forward.4} parent=15 // pred_check_branch
        %150 = sbr.rel (%p148) target = $region20
      $region19: #{spatial_attention_wh_forward.4} parent=15 // pred_region
        %s151 = smul.u32 4, %s17
        %p152 = scmp.lt.s32.totalorder %s16, 1
        %s153 = scalar_select %p152, %s16, 1
        %p154 = scmp.lt.s32.totalorder %s151, 7
        %s155 = scalar_select %p154, %s151, 7
        %s156 = smul.addr %s153, 8
        %s157 = sadd.s32 %s155, %s156
        %s158 = smul.addr %s157, 8
        %s159 = scalar_lea.vmem %s0, %s158
        %s160 = smul.u32 4, %s17
      $region20: #{spatial_attention_wh_forward.4} parent=15 // pred_fallthru
        _
      // Predicated region
      $region21: #{spatial_attention_wh_forward.4} parent=15 // pred_check
        %p161 = pneg %p69
      $region22: #{spatial_attention_wh_forward.4} parent=15 // pred_check_branch
        %163 = sbr.rel (%p161) target = $region24
      $region23: #{spatial_attention_wh_forward.4} parent=15 // pred_region
        %p164 = scmp.lt.s32.totalorder %s16, 1
        %s165 = scalar_select %p164, %s16, 1
        %s166 = smul.addr %s165, 2
        %s167 = smul.addr %s166, 8
        %s168 = scalar_lea.vmem %s1, %s167
      $region24: #{spatial_attention_wh_forward.4} parent=15 // pred_fallthru
        _
      // Predicated region
      $region25: #{spatial_attention_wh_forward.4} parent=15 // pred_check
        %p169 = pneg %p95
      $region26: #{spatial_attention_wh_forward.4} parent=15 // pred_check_branch
        %171 = sbr.rel (%p169) target = $region28
      $region27: #{spatial_attention_wh_forward.4} parent=15 // pred_region
        %p172 = scmp.lt.s32.totalorder %s16, 1
        %s173 = scalar_select %p172, %s16, 1
        %s174 = smul.addr %s173, 2
        %s175 = smul.addr %s174, 8
        %s176 = scalar_lea.vmem %s2, %s175
      $region28: #{spatial_attention_wh_forward.4} parent=15 // pred_fallthru
        _
    $region16: #{spatial_attention_wh_forward.4} parent=5 // pred_fallthru
      _
    %p177 = scmp.le.s32.totalorder 1, %s9
    %p178 = scmp.lt.s32.totalorder %s9, 5
    %p179 = pnand %p177, %p178
    %p180 = pneg %p179
    // Predicated region
    $region29: #{spatial_attention_wh_forward.4} parent=5 // pred_check
      _
    $region30: #{spatial_attention_wh_forward.4} parent=5 // pred_check_branch
      %182 = sbr.rel (%p179) target = $region32
    $region31: #{spatial_attention_wh_forward.4} parent=5 // pred_region
      %s183 = ssub.s32 %s9, 1
      %s184 = smul.u32 4, %s19
      %p185 = scmp.lt.s32.totalorder %s18, 1
      %s186 = scalar_select %p185, %s18, 1
      %p187 = scmp.lt.s32.totalorder %s184, 7
      %s188 = scalar_select %p187, %s184, 7
      %s189 = smul.addr %s186, 8
      %s190 = sadd.s32 %s188, %s189
      %s191 = smul.addr %s190, 8
      %s192 = scalar_lea.vmem %s0, %s191
      %p193 = pneg %p49
      %p194 = pneg %p46
      %p195 = scmp.lt.s32.totalorder %s18, 1
      %s196 = scalar_select %p195, %s18, 1
      %s197 = smul.addr %s196, 2
      %s198 = smul.addr %s197, 8
      %s199 = scalar_lea.vmem %s1, %s198
      %p200 = pneg %p75
      %p201 = pneg %p72
      %p202 = scmp.lt.s32.totalorder %s18, 1
      %s203 = scalar_select %p202, %s18, 1
      %s204 = smul.addr %s203, 2
      %s205 = smul.addr %s204, 8
      %s206 = scalar_lea.vmem %s2, %s205
      %p207 = pneg %p101
      %p208 = pneg %p98
      %p209 = pneg %p129
      %p210 = pneg %p126
      %s211 = smul.u32 4, %s19
      %p212 = scmp.lt.s32.totalorder %s18, 1
      %s213 = scalar_select %p212, %s18, 1
      %p214 = scmp.lt.s32.totalorder %s211, 7
      %s215 = scalar_select %p214, %s211, 7
      %s216 = smul.addr %s213, 8
      %s217 = sadd.s32 %s215, %s216
      %s218 = smul.addr %s217, 8
      %s219 = scalar_lea.vmem %s3, %s218
      %s220 = smul.u32 4, %s19
      %p221 = scmp.lt.s32.totalorder %s18, 1
      %s222 = scalar_select %p221, %s18, 1
      %p223 = scmp.lt.s32.totalorder %s220, 7
      %s224 = scalar_select %p223, %s220, 7
      %s225 = smul.addr %s222, 8
      %s226 = sadd.s32 %s224, %s225
      %s227 = smul.addr %s226, 8
      %s228 = scalar_lea.vmem %s0, %s227
      %s229 = smul.u32 4, %s19
      %p230 = scmp.lt.s32.totalorder %s18, 1
      %s231 = scalar_select %p230, %s18, 1
      %s232 = smul.addr %s231, 2
      %s233 = smul.addr %s232, 8
      %s234 = scalar_lea.vmem %s1, %s233
      %p235 = scmp.lt.s32.totalorder %s18, 1
      %s236 = scalar_select %p235, %s18, 1
      %s237 = smul.addr %s236, 2
      %s238 = smul.addr %s237, 8
      %s239 = scalar_lea.vmem %s2, %s238
      %s240 = smul.u32 4, %s19
      %p241 = scmp.lt.s32.totalorder %s18, 1
      %s242 = scalar_select %p241, %s18, 1
      %p243 = scmp.lt.s32.totalorder %s240, 7
      %s244 = scalar_select %p243, %s240, 7
      %s245 = smul.addr %s242, 8
      %s246 = sadd.s32 %s244, %s245
      %s247 = smul.addr %s246, 8
      %s248 = scalar_lea.vmem %s3, %s247
      %s249 = smul.u32 4, %s19
      %v250 = vld [vmem:[%s228] sm:$0xff]
      %v251 = vld [vmem:[%s228 + $0x8] sm:$0xff]
      %v252 = vld [vmem:[%s228 + $0x10] sm:$0xff]
      %v253 = vld [vmem:[%s228 + $0x18] sm:$0xff]
      %v254 = vld [vmem:[%s234] sm:$0xff]
      %v255 = vld [vmem:[%s234 + $0x8] sm:$0xff]
      %v256 = vld [vmem:[%s239] sm:$0xff]
      %v257 = vld [vmem:[%s239 + $0x8] sm:$0xff]
      %vm258 = vcmask 15360
      %v260 = vsel %vm258, %v250, 0
      %v263 = vsel %vm258, %v251, 0
      %v266 = vsel %vm258, %v252, 0
      %v269 = vsel %vm258, %v253, 0
      %v272 = vsel %vm258, %v254, 0
      %v275 = vsel %vm258, %v255, 0
      %277 = vmatprep.subr.mxu0 0.0
      %278 = vmatpush1.xpose.msra.mxu0 0.0
      %279 = vmatprep.subr.mxu0 0.0
      %280 = vmatpush1.xpose.msra.mxu0 0.0
      %281 = vmatprep.subr.mxu0 0.0
      %282 = vmatpush1.xpose.msra.mxu0 0.0
      %283 = vmatprep.subr.mxu0 0.0
      %284 = vmatpush1.xpose.msra.mxu0 0.0
      %285 = vmatprep.subr.mxu0 0.0
      %286 = vmatpush1.xpose.msra.mxu0 0.0
      %287 = vmatprep.subr.mxu0 0.0
      %288 = vmatpush1.xpose.msra.mxu0 0.0
      %289 = vmatprep.subr.mxu0 0.0
      %290 = vmatpush1.xpose.msra.mxu0 0.0
      %291 = vmatprep.subr.mxu0 0.0
      %292 = vmatpush1.xpose.msra.mxu0 0.0
      %293 = vmatprep.subr.mxu0 0.0
      %294 = vmatpush1.xpose.msra.mxu0 0.0
      %295 = vmatprep.subr.mxu0 0.0
      %296 = vmatpush1.xpose.msra.mxu0 0.0
      %297 = vmatprep.subr.mxu0 0.0
      %298 = vmatpush1.xpose.msra.mxu0 0.0
      %299 = vmatprep.subr.mxu0 0.0
      %300 = vmatpush1.xpose.msra.mxu0 0.0
      %301 = vmatprep.subr.mxu0 0.0
      %302 = vmatpush1.xpose.msra.mxu0 0.0
      %303 = vmatprep.subr.mxu0 0.0
      %304 = vmatpush1.xpose.msra.mxu0 0.0
      %305 = vmatprep.subr.mxu0 0.0
      %306 = vmatpush1.xpose.msra.mxu0 %v275
      %307 = vmatprep.subr.mxu0 0.0
      %308 = vmatpush1.xpose.msra.mxu0 %v272
      %309 = vmatprep.subr.mxu0 0.0
      %310 = vmatpush2.xpose.msra.mxu0 0.0
      %311 = vmatprep.subr.mxu0 0.0
      %312 = vmatpush2.xpose.msra.mxu0 0.0
      %313 = vmatprep.subr.mxu0 0.0
      %314 = vmatpush2.xpose.msra.mxu0 0.0
      %315 = vmatprep.subr.mxu0 0.0
      %316 = vmatpush2.xpose.msra.mxu0 0.0
      %317 = vmatprep.subr.mxu0 0.0
      %318 = vmatpush2.xpose.msra.mxu0 0.0
      %319 = vmatprep.subr.mxu0 0.0
      %320 = vmatpush2.xpose.msra.mxu0 0.0
      %321 = vmatprep.subr.mxu0 0.0
      %322 = vmatpush2.xpose.msra.mxu0 0.0
      %323 = vmatprep.subr.mxu0 0.0
      %324 = vmatpush2.xpose.msra.mxu0 0.0
      %325 = vmatprep.subr.mxu0 0.0
      %326 = vmatpush2.xpose.msra.mxu0 0.0
      %327 = vmatprep.subr.mxu0 0.0
      %328 = vmatpush2.xpose.msra.mxu0 0.0
      %329 = vmatprep.subr.mxu0 0.0
      %330 = vmatpush2.xpose.msra.mxu0 0.0
      %331 = vmatprep.subr.mxu0 0.0
      %332 = vmatpush2.xpose.msra.mxu0 0.0
      %333 = vmatprep.subr.mxu0 0.0
      %334 = vmatpush2.xpose.msra.mxu0 0.0
      %335 = vmatprep.subr.mxu0 0.0
      %336 = vmatpush2.xpose.msra.mxu0 0.0
      %337 = vmatprep.subr.mxu0 0.0
      %338 = vmatpush2.xpose.msra.mxu0 0.0
      %339 = vmatprep.subr.mxu0 0.0
      %340 = vmatpush2.xpose.msra.mxu0 0.0
      %341 = vmatprep.mubr.f32.mxu0 0.0
      %342 = vmatmul.mubr.f32.gmra.mxu0 %v260
      %v343 = vpop.f32.mrf.mxu0
      %v344 = vadd.f32 0.0, %v343
      %v345 = vpop.f32.mrf.mxu0
      %346 = vmatprep.mubr.f32.mxu0 0.0
      %347 = vmatmul.mubr.f32.gmra.mxu0 %v263
      %v348 = vpop.f32.mrf.mxu0
      %v349 = vadd.f32 0.0, %v348
      %v350 = vpop.f32.mrf.mxu0
      %351 = vmatprep.mubr.f32.mxu0 0.0
      %352 = vmatmul.mubr.f32.gmra.mxu0 %v266
      %v353 = vpop.f32.mrf.mxu0
      %v354 = vadd.f32 0.0, %v353
      %v355 = vpop.f32.mrf.mxu0
      %356 = vmatprep.mubr.f32.mxu0 0.0
      %357 = vmatmul.mubr.f32.gmra.mxu0 %v269
      %v358 = vpop.f32.mrf.mxu0
      %v359 = vadd.f32 0.0, %v358
      %v360 = vpop.f32.mrf.mxu0
      %361 = vdwg.mxu0
      %vm362 = vcmask 130048
      %v363 = vsel %vm362, %v344, -inf
      %364 = vmax.xlane.f32.xlu0 %v363
      %v365 = vpop.xlane.xlu0 %364
      %v366 = vsel %vm362, %v349, -inf
      %367 = vmax.xlane.f32.xlu0 %v366
      %v368 = vpop.xlane.xlu0 %367
      %v369 = vsel %vm362, %v354, -inf
      %370 = vmax.xlane.f32.xlu0 %v369
      %v371 = vpop.xlane.xlu0 %370
      %v372 = vsel %vm362, %v359, -inf
      %373 = vmax.xlane.f32.xlu0 %v372
      %v374 = vpop.xlane.xlu0 %373
      %v375 = vsub.f32 %v344, %v365
      %v376 = vsub.f32 %v349, %v368
      %v377 = vsub.f32 %v354, %v371
      %v378 = vsub.f32 %v359, %v374
      %v379 = vmul.f32 %v375, 1.442695
      %v380 = vpow.pop %v379
      %v381 = vmul.f32 %v376, 1.442695
      %v382 = vpow.pop %v381
      %v383 = vmul.f32 %v377, 1.442695
      %v384 = vpow.pop %v383
      %v385 = vmul.f32 %v378, 1.442695
      %v386 = vpow.pop %v385
      %v387 = vsel %vm362, %v380, 0.0
      %388 = vadd.xlane.f32.xlu0 %v387
      %v389 = vpop.xlane.xlu0 %388
      %v390 = vsel %vm362, %v382, 0.0
      %391 = vadd.xlane.f32.xlu0 %v390
      %v392 = vpop.xlane.xlu0 %391
      %v393 = vsel %vm362, %v384, 0.0
      %394 = vadd.xlane.f32.xlu0 %v393
      %v395 = vpop.xlane.xlu0 %394
      %v396 = vsel %vm362, %v386, 0.0
      %397 = vadd.xlane.f32.xlu0 %v396
      %v398 = vpop.xlane.xlu0 %397
      %v400 = vsel %vm362, %v380, 0
      %v403 = vsel %vm362, %v382, 0
      %v406 = vsel %vm362, %v384, 0
      %v409 = vsel %vm362, %v386, 0
      %411 = vmatprep.subr.mxu0 0.0
      %412 = vmatpush1.msra.mxu0 0.0
      %413 = vmatprep.subr.mxu0 0.0
      %414 = vmatpush1.msra.mxu0 0.0
      %415 = vmatprep.subr.mxu0 0.0
      %416 = vmatpush1.msra.mxu0 0.0
      %417 = vmatprep.subr.mxu0 0.0
      %418 = vmatpush1.msra.mxu0 0.0
      %419 = vmatprep.subr.mxu0 0.0
      %420 = vmatpush1.msra.mxu0 0.0
      %421 = vmatprep.subr.mxu0 0.0
      %422 = vmatpush1.msra.mxu0 0.0
      %423 = vmatprep.subr.mxu0 0.0
      %424 = vmatpush1.msra.mxu0 0.0
      %425 = vmatprep.subr.mxu0 0.0
      %426 = vmatpush1.msra.mxu0 0.0
      %427 = vmatprep.subr.mxu0 0.0
      %428 = vmatpush1.msra.mxu0 0.0
      %429 = vmatprep.subr.mxu0 0.0
      %430 = vmatpush1.msra.mxu0 0.0
      %431 = vmatprep.subr.mxu0 0.0
      %432 = vmatpush1.msra.mxu0 0.0
      %433 = vmatprep.subr.mxu0 0.0
      %434 = vmatpush1.msra.mxu0 0.0
      %435 = vmatprep.subr.mxu0 0.0
      %436 = vmatpush1.msra.mxu0 0.0
      %437 = vmatprep.subr.mxu0 0.0
      %438 = vmatpush1.msra.mxu0 0.0
      %439 = vmatprep.subr.mxu0 0.0
      %440 = vmatpush1.msra.mxu0 %v257
      %441 = vmatprep.subr.mxu0 0.0
      %442 = vmatpush1.msra.mxu0 %v256
      %443 = vmatprep.subr.mxu0 0.0
      %444 = vmatpush2.msra.mxu0 0.0
      %445 = vmatprep.subr.mxu0 0.0
      %446 = vmatpush2.msra.mxu0 0.0
      %447 = vmatprep.subr.mxu0 0.0
      %448 = vmatpush2.msra.mxu0 0.0
      %449 = vmatprep.subr.mxu0 0.0
      %450 = vmatpush2.msra.mxu0 0.0
      %451 = vmatprep.subr.mxu0 0.0
      %452 = vmatpush2.msra.mxu0 0.0
      %453 = vmatprep.subr.mxu0 0.0
      %454 = vmatpush2.msra.mxu0 0.0
      %455 = vmatprep.subr.mxu0 0.0
      %456 = vmatpush2.msra.mxu0 0.0
      %457 = vmatprep.subr.mxu0 0.0
      %458 = vmatpush2.msra.mxu0 0.0
      %459 = vmatprep.subr.mxu0 0.0
      %460 = vmatpush2.msra.mxu0 0.0
      %461 = vmatprep.subr.mxu0 0.0
      %462 = vmatpush2.msra.mxu0 0.0
      %463 = vmatprep.subr.mxu0 0.0
      %464 = vmatpush2.msra.mxu0 0.0
      %465 = vmatprep.subr.mxu0 0.0
      %466 = vmatpush2.msra.mxu0 0.0
      %467 = vmatprep.subr.mxu0 0.0
      %468 = vmatpush2.msra.mxu0 0.0
      %469 = vmatprep.subr.mxu0 0.0
      %470 = vmatpush2.msra.mxu0 0.0
      %471 = vmatprep.subr.mxu0 0.0
      %472 = vmatpush2.msra.mxu0 0.0
      %473 = vmatprep.subr.mxu0 0.0
      %474 = vmatpush2.msra.mxu0 0.0
      %475 = vmatprep.mubr.f32.mxu0 0.0
      %476 = vmatmul.mubr.f32.gmra.mxu0 %v400
      %v477 = vpop.f32.mrf.mxu0
      %v478 = vadd.f32 0.0, %v477
      %v479 = vpop.f32.mrf.mxu0
      %480 = vmatprep.mubr.f32.mxu0 0.0
      %481 = vmatmul.mubr.f32.gmra.mxu0 %v403
      %v482 = vpop.f32.mrf.mxu0
      %v483 = vadd.f32 0.0, %v482
      %v484 = vpop.f32.mrf.mxu0
      %485 = vmatprep.mubr.f32.mxu0 0.0
      %486 = vmatmul.mubr.f32.gmra.mxu0 %v406
      %v487 = vpop.f32.mrf.mxu0
      %v488 = vadd.f32 0.0, %v487
      %v489 = vpop.f32.mrf.mxu0
      %490 = vmatprep.mubr.f32.mxu0 0.0
      %491 = vmatmul.mubr.f32.gmra.mxu0 %v409
      %v492 = vpop.f32.mrf.mxu0
      %v493 = vadd.f32 0.0, %v492
      %v494 = vpop.f32.mrf.mxu0
      %495 = vdwg.mxu0
      %v496 = vrcp.pop %v389
      %v497 = vrcp.pop %v392
      %v498 = vrcp.pop %v395
      %v499 = vrcp.pop %v398
      %v500 = vmul.f32 %v389, %v496
      %v501 = vmul.f32 %v392, %v497
      %v502 = vmul.f32 %v395, %v498
      %v503 = vmul.f32 %v398, %v499
      %v504 = vsub.f32 2.0, %v500
      %v505 = vsub.f32 2.0, %v501
      %v506 = vsub.f32 2.0, %v502
      %v507 = vsub.f32 2.0, %v503
      %v508 = vmul.f32 %v496, %v504
      %v509 = vmul.f32 %v497, %v505
      %v510 = vmul.f32 %v498, %v506
      %v511 = vmul.f32 %v499, %v507
      %v512 = vmul.f32 %v478, %v508
      %v513 = vmul.f32 %v483, %v509
      %v514 = vmul.f32 %v488, %v510
      %v515 = vmul.f32 %v493, %v511
      %516 = vst.msk [vmem:[%s248] sm:$0xff] %vm258, %v512
      %517 = vst.msk [vmem:[%s248 + $0x8] sm:$0xff] %vm258, %v513
      %518 = vst.msk [vmem:[%s248 + $0x10] sm:$0xff] %vm258, %v514
      %519 = vst.msk [vmem:[%s248 + $0x18] sm:$0xff] %vm258, %v515
      %s520 = smul.u32 4, %s19
      %p521 = scmp.lt.s32.totalorder %s18, 1
      %s522 = scalar_select %p521, %s18, 1
      %p523 = scmp.lt.s32.totalorder %s520, 7
      %s524 = scalar_select %p523, %s520, 7
      %s525 = smul.addr %s522, 8
      %s526 = sadd.s32 %s524, %s525
      %s527 = smul.addr %s526, 8
      %s528 = scalar_lea.vmem %s3, %s527
      // Predicated region
      $region33: #{spatial_attention_wh_forward.4} parent=31 // pred_check
        %p529 = pneg %p126
      $region34: #{spatial_attention_wh_forward.4} parent=31 // pred_check_branch
        %531 = sbr.rel (%p529) target = $region36
      $region35: #{spatial_attention_wh_forward.4} parent=31 // pred_region
        %s532 = smul.u32 4, %s19
      $region36: #{spatial_attention_wh_forward.4} parent=31 // pred_fallthru
        _
    $region32: #{spatial_attention_wh_forward.4} parent=5 // pred_fallthru
      _
    %p533 = scmp.le.s32.totalorder 2, %s9
    // Predicated region
    $region37: #{spatial_attention_wh_forward.4} parent=5 // pred_check
      %p534 = pneg %p533
    $region38: #{spatial_attention_wh_forward.4} parent=5 // pred_check_branch
      %536 = sbr.rel (%p534) target = $region40
    $region39: #{spatial_attention_wh_forward.4} parent=5 // pred_region
      %s537 = ssub.s32 %s9, 2
      // Predicated region
      $region41: #{spatial_attention_wh_forward.4} parent=39 // pred_check
        %p538 = pneg %p132
      $region42: #{spatial_attention_wh_forward.4} parent=39 // pred_check_branch
        %540 = sbr.rel (%p538) target = $region44
      $region43: #{spatial_attention_wh_forward.4} parent=39 // pred_region
        %s541 = smul.u32 4, %s21
        %p542 = scmp.lt.s32.totalorder %s20, 1
        %s543 = scalar_select %p542, %s20, 1
        %p544 = scmp.lt.s32.totalorder %s541, 7
        %s545 = scalar_select %p544, %s541, 7
        %s546 = smul.addr %s543, 8
        %s547 = sadd.s32 %s545, %s546
        %s548 = smul.addr %s547, 8
        %s549 = scalar_lea.vmem %s3, %s548
      $region44: #{spatial_attention_wh_forward.4} parent=39 // pred_fallthru
        _
    $region40: #{spatial_attention_wh_forward.4} parent=5 // pred_fallthru
      _
  $region6: #{spatial_attention_wh_forward.4} parent=0 // loop_footer
    %s13 = sadd.s32 1, %s9
  $region7: #{spatial_attention_wh_forward.4} parent=0 // loop_footer_branch
    %8 = sbr.rel target = $region3
  $region8: #{spatial_attention_wh_forward.4} parent=0 // loop_exit
    _

// kernel: spatial_attention_wh_forward.5
$region0: #{spatial_attention_wh_forward.5}
  #allocation0 [shape = 'u32[]', space=smem, size = 0x4, offset = 0x4, fixed_abs, tag = 'smem constant byte address 0x4 - core index']
  #allocation1 [shape = 'u32[144,128]{1,0:T(1,128)}', space=vmem, size = 0x12000, scoped, tag = 'internal scratch']
  %s0 = inlined_call_operand.vmem [shape: f32[2,18,18,2], index: 0, kind: input, shape index: {}]
  %s1 = inlined_call_operand.vmem [shape: f32[18,4], index: 1, kind: input, shape index: {}]
  %s2 = inlined_call_operand.vmem [shape: f32[1,4], index: 2, kind: input, shape index: {}]
  %s3 = inlined_call_operand.vmem [shape: f32[2,16,16,4], index: 3, kind: input, shape index: {}]
  %s4 = inlined_call_operand.vmem [shape: f32[2,16,16,4], index: 4, kind: output, shape index: {}]
  %s5 = sld [smem:[#allocation0]]
  $region49: #{spatial_attention_wh_forward.5} parent=0
    _
  %s7 = ssub.s32 1, %s5
  %s8 = scalar_select 0, %s7, %s5
  loop: start=0, step=1, limit=6
  $region2: #{spatial_attention_wh_forward.5} parent=0 // loop_pre_header
    _
  $region3: #{spatial_attention_wh_forward.5} parent=0 // loop_header
    %s10 = sphi 0, %s14
    %p11 = scmp.ge.s32.totalorder %s10, 6
    %s17 = sphi 0, %s29
    %s18 = sphi 0, %s25
    %s19 = sphi 0, %s17
    %s20 = sphi 0, %s18
    %s21 = sphi 0, %s19
    %s22 = sphi 0, %s20
    %s32 = sphi 0, %s34
    %s35 = sphi 0, %s32
    %s36 = sphi 0, %s35
    %s52 = sphi 0, %s36
    %s56 = sphi 0, %s56
    %s58 = sphi 0, %s56
    %s59 = sphi 0, %s58
    %s73 = sphi 0, %s59
    %s77 = sphi 0, %s77
    %s79 = sphi 0, %s77
    %s80 = sphi 0, %s79
    %s94 = sphi 0, %s80
    %s102 = sphi 0, %s104
    %s105 = sphi 0, %s102
    %s106 = sphi 0, %s105
    %s122 = sphi 0, %s106
    %s130 = sphi 0, %s132
    %s133 = sphi 0, %s130
    %s134 = sphi 0, %s133
    %s150 = sphi 0, %s134
  $region4: #{spatial_attention_wh_forward.5} parent=0 // loop_header_branch
    %13 = sbr.rel (%p11) target = $region8
  $region5: #{spatial_attention_wh_forward.5} parent=0 // loop_body
    %s15 = ssub.s32 %s10, 1
    %s16 = ssub.s32 %s10, 2
    %s23 = sadd.s32 1, %s18
    %p24 = scmp.ge.s32.totalorder %s23, 2
    %s25 = scalar_select %p24, 0, %s23
    %s26 = sadd.s32 1, %s17
    %s27 = scalar_select %p24, %s26, %s17
    %p28 = scmp.ge.s32.totalorder %s27, 2
    %s29 = scalar_select %p28, 0, %s27
    %s30 = ssub.s32 %s17, %s29
    %p31 = scmp.eq.s32.totalorder %s30, 0
    %s33 = sadd.s32 %s32, 1
    %s34 = scalar_select %p31, %s32, %s33
    %p37 = pneg %p31
    %p38 = scmp.eq.s32.totalorder %s10, 3
    %p39 = por %p37, %p38
    %p40 = scmp.ne.s32.totalorder %s32, %s35
    %p41 = scmp.eq.s32.totalorder %s10, 0
    %p42 = por %p40, %p41
    %p43 = scmp.ne.s32.totalorder %s32, %s35
    %p44 = scmp.eq.s32.totalorder %s15, 3
    %p45 = por %p43, %p44
    %p46 = scmp.ne.s32.totalorder %s35, %s36
    %p47 = scmp.eq.s32.totalorder %s15, 0
    %p48 = por %p46, %p47
    %p49 = scmp.ne.s32.totalorder %s35, %s36
    %p50 = scmp.eq.s32.totalorder %s16, 3
    %p51 = por %p49, %p50
    %p53 = scmp.ne.s32.totalorder %s36, %s52
    %p54 = scmp.eq.s32.totalorder %s16, 0
    %p55 = por %p53, %p54
    %s57 = sadd.s32 %s56, 1
    %p60 = scmp.eq.s32.totalorder %s10, 3
    %p61 = scmp.ne.s32.totalorder %s56, %s58
    %p62 = scmp.eq.s32.totalorder %s10, 0
    %p63 = por %p61, %p62
    %p64 = scmp.ne.s32.totalorder %s56, %s58
    %p65 = scmp.eq.s32.totalorder %s15, 3
    %p66 = por %p64, %p65
    %p67 = scmp.ne.s32.totalorder %s58, %s59
    %p68 = scmp.eq.s32.totalorder %s15, 0
    %p69 = por %p67, %p68
    %p70 = scmp.ne.s32.totalorder %s58, %s59
    %p71 = scmp.eq.s32.totalorder %s16, 3
    %p72 = por %p70, %p71
    %p74 = scmp.ne.s32.totalorder %s59, %s73
    %p75 = scmp.eq.s32.totalorder %s16, 0
    %p76 = por %p74, %p75
    %s78 = sadd.s32 %s77, 1
    %p81 = scmp.eq.s32.totalorder %s10, 3
    %p82 = scmp.ne.s32.totalorder %s77, %s79
    %p83 = scmp.eq.s32.totalorder %s10, 0
    %p84 = por %p82, %p83
    %p85 = scmp.ne.s32.totalorder %s77, %s79
    %p86 = scmp.eq.s32.totalorder %s15, 3
    %p87 = por %p85, %p86
    %p88 = scmp.ne.s32.totalorder %s79, %s80
    %p89 = scmp.eq.s32.totalorder %s15, 0
    %p90 = por %p88, %p89
    %p91 = scmp.ne.s32.totalorder %s79, %s80
    %p92 = scmp.eq.s32.totalorder %s16, 3
    %p93 = por %p91, %p92
    %p95 = scmp.ne.s32.totalorder %s80, %s94
    %p96 = scmp.eq.s32.totalorder %s16, 0
    %p97 = por %p95, %p96
    %s98 = ssub.s32 %s17, %s29
    %s99 = ssub.s32 %s18, %s25
    %s100 = sor.u32 %s98, %s99
    %p101 = scmp.eq.s32.totalorder %s100, 0
    %s103 = sadd.s32 %s102, 1
    %s104 = scalar_select %p101, %s102, %s103
    %p107 = pneg %p101
    %p108 = scmp.eq.s32.totalorder %s10, 3
    %p109 = por %p107, %p108
    %p110 = scmp.ne.s32.totalorder %s102, %s105
    %p111 = scmp.eq.s32.totalorder %s10, 0
    %p112 = por %p110, %p111
    %p113 = scmp.ne.s32.totalorder %s102, %s105
    %p114 = scmp.eq.s32.totalorder %s15, 3
    %p115 = por %p113, %p114
    %p116 = scmp.ne.s32.totalorder %s105, %s106
    %p117 = scmp.eq.s32.totalorder %s15, 0
    %p118 = por %p116, %p117
    %p119 = scmp.ne.s32.totalorder %s105, %s106
    %p120 = scmp.eq.s32.totalorder %s16, 3
    %p121 = por %p119, %p120
    %p123 = scmp.ne.s32.totalorder %s106, %s122
    %p124 = scmp.eq.s32.totalorder %s16, 0
    %p125 = por %p123, %p124
    %s126 = ssub.s32 %s17, %s29
    %s127 = ssub.s32 %s18, %s25
    %s128 = sor.u32 %s126, %s127
    %p129 = scmp.eq.s32.totalorder %s128, 0
    %s131 = sadd.s32 %s130, 1
    %s132 = scalar_select %p129, %s130, %s131
    %p135 = pneg %p129
    %p136 = scmp.eq.s32.totalorder %s10, 3
    %p137 = por %p135, %p136
    %p138 = scmp.ne.s32.totalorder %s130, %s133
    %p139 = scmp.eq.s32.totalorder %s10, 0
    %p140 = por %p138, %p139
    %p141 = scmp.ne.s32.totalorder %s130, %s133
    %p142 = scmp.eq.s32.totalorder %s15, 3
    %p143 = por %p141, %p142
    %p144 = scmp.ne.s32.totalorder %s133, %s134
    %p145 = scmp.eq.s32.totalorder %s15, 0
    %p146 = por %p144, %p145
    %p147 = scmp.ne.s32.totalorder %s133, %s134
    %p148 = scmp.eq.s32.totalorder %s16, 3
    %p149 = por %p147, %p148
    %p151 = scmp.ne.s32.totalorder %s134, %s150
    %p152 = scmp.eq.s32.totalorder %s16, 0
    %p153 = por %p151, %p152
    %p154 = scmp.le.s32.totalorder 1, %s10
    %p155 = scmp.lt.s32.totalorder %s10, 5
    %p156 = pnand %p154, %p155
    %p157 = pneg %p156
    // Predicated region
    $region9: #{spatial_attention_wh_forward.5} parent=5 // pred_check
      _
    $region10: #{spatial_attention_wh_forward.5} parent=5 // pred_check_branch
      %159 = sbr.rel (%p156) target = $region12
    $region11: #{spatial_attention_wh_forward.5} parent=5 // pred_region
      %s160 = ssub.s32 %s10, 1
      // Predicated region
      $region13: #{spatial_attention_wh_forward.5} parent=11 // pred_check
        %p161 = pneg %p69
      $region14: #{spatial_attention_wh_forward.5} parent=11 // pred_check_branch
        %163 = sbr.rel (%p161) target = $region16
      $region15: #{spatial_attention_wh_forward.5} parent=11 // pred_region
        _
      $region16: #{spatial_attention_wh_forward.5} parent=11 // pred_fallthru
        _
      // Predicated region
      $region17: #{spatial_attention_wh_forward.5} parent=11 // pred_check
        %p164 = pneg %p90
      $region18: #{spatial_attention_wh_forward.5} parent=11 // pred_check_branch
        %166 = sbr.rel (%p164) target = $region20
      $region19: #{spatial_attention_wh_forward.5} parent=11 // pred_region
        _
      $region20: #{spatial_attention_wh_forward.5} parent=11 // pred_fallthru
        _
    $region12: #{spatial_attention_wh_forward.5} parent=5 // pred_fallthru
      _
    %p167 = scmp.lt.s32.totalorder %s10, 4
    // Predicated region
    $region21: #{spatial_attention_wh_forward.5} parent=5 // pred_check
      %p168 = pneg %p167
    $region22: #{spatial_attention_wh_forward.5} parent=5 // pred_check_branch
      %170 = sbr.rel (%p168) target = $region24
    $region23: #{spatial_attention_wh_forward.5} parent=5 // pred_region
      // Predicated region
      $region25: #{spatial_attention_wh_forward.5} parent=23 // pred_check
        %p171 = pneg %p42
      $region26: #{spatial_attention_wh_forward.5} parent=23 // pred_check_branch
        %173 = sbr.rel (%p171) target = $region28
      $region27: #{spatial_attention_wh_forward.5} parent=23 // pred_region
        %p174 = scmp.lt.s32.totalorder %s17, 1
        %s175 = scalar_select %p174, %s17, 1
        %s176 = smul.addr %s175, 54
        %s177 = smul.addr %s176, 8
        %s178 = scalar_lea.vmem %s0, %s177
      $region28: #{spatial_attention_wh_forward.5} parent=23 // pred_fallthru
        _
      // Predicated region
      $region29: #{spatial_attention_wh_forward.5} parent=23 // pred_check
        %p179 = pneg %p112
      $region30: #{spatial_attention_wh_forward.5} parent=23 // pred_check_branch
        %181 = sbr.rel (%p179) target = $region32
      $region31: #{spatial_attention_wh_forward.5} parent=23 // pred_region
        %s182 = smul.u32 8, %s18
        %p183 = scmp.lt.s32.totalorder %s17, 1
        %s184 = scalar_select %p183, %s17, 1
        %p185 = scmp.lt.s32.totalorder %s182, 15
        %s186 = scalar_select %p185, %s182, 15
        %s187 = smul.addr %s186, 2
        %s188 = smul.addr %s184, 32
        %s189 = sadd.s32 %s187, %s188
        %s190 = smul.addr %s189, 8
        %s191 = scalar_lea.vmem %s3, %s190
        %s192 = smul.u32 8, %s18
      $region32: #{spatial_attention_wh_forward.5} parent=23 // pred_fallthru
        _
    $region24: #{spatial_attention_wh_forward.5} parent=5 // pred_fallthru
      _
    %p193 = scmp.le.s32.totalorder 1, %s10
    %p194 = scmp.lt.s32.totalorder %s10, 5
    %p195 = pnand %p193, %p194
    %p196 = pneg %p195
    // Predicated region
    $region33: #{spatial_attention_wh_forward.5} parent=5 // pred_check
      _
    $region34: #{spatial_attention_wh_forward.5} parent=5 // pred_check_branch
      %198 = sbr.rel (%p195) target = $region36
    $region35: #{spatial_attention_wh_forward.5} parent=5 // pred_region
      %s199 = ssub.s32 %s10, 1
      %p200 = scmp.lt.s32.totalorder %s19, 1
      %s201 = scalar_select %p200, %s19, 1
      %s202 = smul.addr %s201, 54
      %s203 = smul.addr %s202, 8
      %s204 = scalar_lea.vmem %s0, %s203
      %p205 = pneg %p48
      %p206 = pneg %p45
      %p207 = pneg %p69
      %p208 = pneg %p66
      %p209 = pneg %p90
      %p210 = pneg %p87
      %s211 = smul.u32 8, %s20
      %p212 = scmp.lt.s32.totalorder %s19, 1
      %s213 = scalar_select %p212, %s19, 1
      %p214 = scmp.lt.s32.totalorder %s211, 15
      %s215 = scalar_select %p214, %s211, 15
      %s216 = smul.addr %s215, 2
      %s217 = smul.addr %s213, 32
      %s218 = sadd.s32 %s216, %s217
      %s219 = smul.addr %s218, 8
      %s220 = scalar_lea.vmem %s3, %s219
      %p221 = pneg %p118
      %p222 = pneg %p115
      %p223 = pneg %p146
      %p224 = pneg %p143
      %s225 = smul.u32 8, %s20
      %p226 = scmp.lt.s32.totalorder %s19, 1
      %s227 = scalar_select %p226, %s19, 1
      %p228 = scmp.lt.s32.totalorder %s225, 15
      %s229 = scalar_select %p228, %s225, 15
      %s230 = smul.addr %s229, 2
      %s231 = smul.addr %s227, 32
      %s232 = sadd.s32 %s230, %s231
      %s233 = smul.addr %s232, 8
      %s234 = scalar_lea.vmem %s4, %s233
      %p235 = scmp.lt.s32.totalorder %s19, 1
      %s236 = scalar_select %p235, %s19, 1
      %s237 = smul.addr %s236, 54
      %s238 = smul.addr %s237, 8
      %s239 = scalar_lea.vmem %s0, %s238
      %s240 = smul.u32 8, %s20
      %p241 = scmp.lt.s32.totalorder %s19, 1
      %s242 = scalar_select %p241, %s19, 1
      %p243 = scmp.lt.s32.totalorder %s240, 15
      %s244 = scalar_select %p243, %s240, 15
      %s245 = smul.addr %s244, 2
      %s246 = smul.addr %s242, 32
      %s247 = sadd.s32 %s245, %s246
      %s248 = smul.addr %s247, 8
      %s249 = scalar_lea.vmem %s3, %s248
      %s250 = smul.u32 8, %s20
      %s251 = smul.u32 8, %s20
      %p252 = scmp.lt.s32.totalorder %s19, 1
      %s253 = scalar_select %p252, %s19, 1
      %p254 = scmp.lt.s32.totalorder %s251, 15
      %s255 = scalar_select %p254, %s251, 15
      %s256 = smul.addr %s255, 2
      %s257 = smul.addr %s253, 32
      %s258 = sadd.s32 %s256, %s257
      %s259 = smul.addr %s258, 8
      %s260 = scalar_lea.vmem %s4, %s259
      %s261 = smul.u32 8, %s20
      %s262 = smul.u32 %s20, 8
      %s263 = smul.u32 %s262, 24
      %s264 = scalar_lea.vmem %s239, %s263
      %v265 = vld [vmem:[%s264] sm:$0xff]
      %v266 = vld [vmem:[%s264 + $0x8] sm:$0xff]
      %v267 = vld [vmem:[%s264 + $0x10] sm:$0x3]
      %v268 = vld [vmem:[%s264 + $0x18] sm:$0xff]
      %v269 = vld [vmem:[%s264 + $0x20] sm:$0xff]
      %v270 = vld [vmem:[%s264 + $0x28] sm:$0x3]
      %v271 = vld [vmem:[%s264 + $0x30] sm:$0xff]
      %v272 = vld [vmem:[%s264 + $0x38] sm:$0xff]
      %v273 = vld [vmem:[%s264 + $0x40] sm:$0x3]
      %v274 = vld [vmem:[%s264 + $0x48] sm:$0xff]
      %v275 = vld [vmem:[%s264 + $0x50] sm:$0xff]
      %v276 = vld [vmem:[%s264 + $0x58] sm:$0x3]
      %v277 = vld [vmem:[%s264 + $0x60] sm:$0xff]
      %v278 = vld [vmem:[%s264 + $0x68] sm:$0xff]
      %v279 = vld [vmem:[%s264 + $0x70] sm:$0x3]
      %v280 = vld [vmem:[%s264 + $0x78] sm:$0xff]
      %v281 = vld [vmem:[%s264 + $0x80] sm:$0xff]
      %v282 = vld [vmem:[%s264 + $0x88] sm:$0x3]
      %v283 = vld [vmem:[%s264 + $0x90] sm:$0xff]
      %v284 = vld [vmem:[%s264 + $0x98] sm:$0xff]
      %v285 = vld [vmem:[%s264 + $0xa0] sm:$0x3]
      %v286 = vld [vmem:[%s264 + $0xa8] sm:$0xff]
      %v287 = vld [vmem:[%s264 + $0xb0] sm:$0xff]
      %v288 = vld [vmem:[%s264 + $0xb8] sm:$0x3]
      %v289 = vld [vmem:[%s264 + $0xc0] sm:$0xff]
      %v290 = vld [vmem:[%s264 + $0xc8] sm:$0xff]
      %v291 = vld [vmem:[%s264 + $0xd0] sm:$0x3]
      %v292 = vld [vmem:[%s264 + $0xd8] sm:$0xff]
      %v293 = vld [vmem:[%s264 + $0xe0] sm:$0xff]
      %v294 = vld [vmem:[%s264 + $0xe8] sm:$0x3]
      %vm319 = vcmask 1046528
      %v320 = vrot.slane %v265, 1
      %v321 = vrot.slane %v266, 1
      %v322 = vsel %vm319, %v320, %v321
      %v323 = vrot.slane %v267, 1
      %v324 = vsel %vm319, %v321, %v323
      %v325 = vrot.slane %v268, 1
      %v326 = vrot.slane %v269, 1
      %v327 = vsel %vm319, %v325, %v326
      %v328 = vrot.slane %v270, 1
      %v329 = vsel %vm319, %v326, %v328
      %v330 = vrot.slane %v271, 1
      %v331 = vrot.slane %v272, 1
      %v332 = vsel %vm319, %v330, %v331
      %v333 = vrot.slane %v273, 1
      %v334 = vsel %vm319, %v331, %v333
      %v335 = vrot.slane %v274, 1
      %v336 = vrot.slane %v275, 1
      %v337 = vsel %vm319, %v335, %v336
      %v338 = vrot.slane %v276, 1
      %v339 = vsel %vm319, %v336, %v338
      %v340 = vrot.slane %v277, 1
      %v341 = vrot.slane %v278, 1
      %v342 = vsel %vm319, %v340, %v341
      %v343 = vrot.slane %v279, 1
      %v344 = vsel %vm319, %v341, %v343
      %v345 = vrot.slane %v280, 1
      %v346 = vrot.slane %v281, 1
      %v347 = vsel %vm319, %v345, %v346
      %v348 = vrot.slane %v282, 1
      %v349 = vsel %vm319, %v346, %v348
      %v350 = vrot.slane %v283, 1
      %v351 = vrot.slane %v284, 1
      %v352 = vsel %vm319, %v350, %v351
      %v353 = vrot.slane %v285, 1
      %v354 = vsel %vm319, %v351, %v353
      %v355 = vrot.slane %v286, 1
      %v356 = vrot.slane %v287, 1
      %v357 = vsel %vm319, %v355, %v356
      %v358 = vrot.slane %v288, 1
      %v359 = vsel %vm319, %v356, %v358
      %360 = vrot.lane.b32.xlu0 %v322, 2
      %v361 = vpop.permute.xlu0 %360
      %362 = vrot.lane.b32.xlu0 %v324, 2
      %v363 = vpop.permute.xlu0 %362
      %364 = vrot.lane.b32.xlu0 %v327, 2
      %v365 = vpop.permute.xlu0 %364
      %366 = vrot.lane.b32.xlu0 %v329, 2
      %v367 = vpop.permute.xlu0 %366
      %368 = vrot.lane.b32.xlu0 %v332, 2
      %v369 = vpop.permute.xlu0 %368
      %370 = vrot.lane.b32.xlu0 %v334, 2
      %v371 = vpop.permute.xlu0 %370
      %372 = vrot.lane.b32.xlu0 %v337, 2
      %v373 = vpop.permute.xlu0 %372
      %374 = vrot.lane.b32.xlu0 %v339, 2
      %v375 = vpop.permute.xlu0 %374
      %376 = vrot.lane.b32.xlu0 %v342, 2
      %v377 = vpop.permute.xlu0 %376
      %378 = vrot.lane.b32.xlu0 %v344, 2
      %v379 = vpop.permute.xlu0 %378
      %380 = vrot.lane.b32.xlu0 %v347, 2
      %v381 = vpop.permute.xlu0 %380
      %382 = vrot.lane.b32.xlu0 %v349, 2
      %v383 = vpop.permute.xlu0 %382
      %384 = vrot.lane.b32.xlu0 %v352, 2
      %v385 = vpop.permute.xlu0 %384
      %386 = vrot.lane.b32.xlu0 %v354, 2
      %v387 = vpop.permute.xlu0 %386
      %388 = vrot.lane.b32.xlu0 %v357, 2
      %v389 = vpop.permute.xlu0 %388
      %390 = vrot.lane.b32.xlu0 %v359, 2
      %v391 = vpop.permute.xlu0 %390
      %vm408 = vcmask 1045504
      %v409 = vrot.slane %v265, 2
      %v410 = vrot.slane %v266, 2
      %v411 = vsel %vm408, %v409, %v410
      %v412 = vrot.slane %v267, 2
      %v413 = vsel %vm408, %v410, %v412
      %v414 = vrot.slane %v268, 2
      %v415 = vrot.slane %v269, 2
      %v416 = vsel %vm408, %v414, %v415
      %v417 = vrot.slane %v270, 2
      %v418 = vsel %vm408, %v415, %v417
      %v419 = vrot.slane %v271, 2
      %v420 = vrot.slane %v272, 2
      %v421 = vsel %vm408, %v419, %v420
      %v422 = vrot.slane %v273, 2
      %v423 = vsel %vm408, %v420, %v422
      %v424 = vrot.slane %v274, 2
      %v425 = vrot.slane %v275, 2
      %v426 = vsel %vm408, %v424, %v425
      %v427 = vrot.slane %v276, 2
      %v428 = vsel %vm408, %v425, %v427
      %v429 = vrot.slane %v277, 2
      %v430 = vrot.slane %v278, 2
      %v431 = vsel %vm408, %v429, %v430
      %v432 = vrot.slane %v279, 2
      %v433 = vsel %vm408, %v430, %v432
      %v434 = vrot.slane %v280, 2
      %v435 = vrot.slane %v281, 2
      %v436 = vsel %vm408, %v434, %v435
      %v437 = vrot.slane %v282, 2
      %v438 = vsel %vm408, %v435, %v437
      %v439 = vrot.slane %v283, 2
      %v440 = vrot.slane %v284, 2
      %v441 = vsel %vm408, %v439, %v440
      %v442 = vrot.slane %v285, 2
      %v443 = vsel %vm408, %v440, %v442
      %v444 = vrot.slane %v286, 2
      %v445 = vrot.slane %v287, 2
      %v446 = vsel %vm408, %v444, %v445
      %v447 = vrot.slane %v288, 2
      %v448 = vsel %vm408, %v445, %v447
      %449 = vrot.lane.b32.xlu0 %v411, 4
      %v450 = vpop.permute.xlu0 %449
      %451 = vrot.lane.b32.xlu0 %v413, 4
      %v452 = vpop.permute.xlu0 %451
      %453 = vrot.lane.b32.xlu0 %v416, 4
      %v454 = vpop.permute.xlu0 %453
      %455 = vrot.lane.b32.xlu0 %v418, 4
      %v456 = vpop.permute.xlu0 %455
      %457 = vrot.lane.b32.xlu0 %v421, 4
      %v458 = vpop.permute.xlu0 %457
      %459 = vrot.lane.b32.xlu0 %v423, 4
      %v460 = vpop.permute.xlu0 %459
      %461 = vrot.lane.b32.xlu0 %v426, 4
      %v462 = vpop.permute.xlu0 %461
      %463 = vrot.lane.b32.xlu0 %v428, 4
      %v464 = vpop.permute.xlu0 %463
      %465 = vrot.lane.b32.xlu0 %v431, 4
      %v466 = vpop.permute.xlu0 %465
      %467 = vrot.lane.b32.xlu0 %v433, 4
      %v468 = vpop.permute.xlu0 %467
      %469 = vrot.lane.b32.xlu0 %v436, 4
      %v470 = vpop.permute.xlu0 %469
      %471 = vrot.lane.b32.xlu0 %v438, 4
      %v472 = vpop.permute.xlu0 %471
      %473 = vrot.lane.b32.xlu0 %v441, 4
      %v474 = vpop.permute.xlu0 %473
      %475 = vrot.lane.b32.xlu0 %v443, 4
      %v476 = vpop.permute.xlu0 %475
      %477 = vrot.lane.b32.xlu0 %v446, 4
      %v478 = vpop.permute.xlu0 %477
      %479 = vrot.lane.b32.xlu0 %v448, 4
      %v480 = vpop.permute.xlu0 %479
      %499 = vrot.lane.b32.xlu0 %v268, 6
      %v500 = vpop.permute.xlu0 %499
      %501 = vrot.lane.b32.xlu0 %v269, 6
      %v502 = vpop.permute.xlu0 %501
      %503 = vrot.lane.b32.xlu0 %v271, 6
      %v504 = vpop.permute.xlu0 %503
      %505 = vrot.lane.b32.xlu0 %v272, 6
      %v506 = vpop.permute.xlu0 %505
      %507 = vrot.lane.b32.xlu0 %v274, 6
      %v508 = vpop.permute.xlu0 %507
      %509 = vrot.lane.b32.xlu0 %v275, 6
      %v510 = vpop.permute.xlu0 %509
      %511 = vrot.lane.b32.xlu0 %v277, 6
      %v512 = vpop.permute.xlu0 %511
      %513 = vrot.lane.b32.xlu0 %v278, 6
      %v514 = vpop.permute.xlu0 %513
      %515 = vrot.lane.b32.xlu0 %v280, 6
      %v516 = vpop.permute.xlu0 %515
      %517 = vrot.lane.b32.xlu0 %v281, 6
      %v518 = vpop.permute.xlu0 %517
      %519 = vrot.lane.b32.xlu0 %v283, 6
      %v520 = vpop.permute.xlu0 %519
      %521 = vrot.lane.b32.xlu0 %v284, 6
      %v522 = vpop.permute.xlu0 %521
      %523 = vrot.lane.b32.xlu0 %v286, 6
      %v524 = vpop.permute.xlu0 %523
      %525 = vrot.lane.b32.xlu0 %v287, 6
      %v526 = vpop.permute.xlu0 %525
      %527 = vrot.lane.b32.xlu0 %v289, 6
      %v528 = vpop.permute.xlu0 %527
      %529 = vrot.lane.b32.xlu0 %v290, 6
      %v530 = vpop.permute.xlu0 %529
      %v548 = vrot.slane %v289, 1
      %v549 = vrot.slane %v290, 1
      %v550 = vsel %vm319, %v548, %v549
      %v551 = vrot.slane %v291, 1
      %v552 = vsel %vm319, %v549, %v551
      %553 = vrot.lane.b32.xlu0 %v327, 8
      %v554 = vpop.permute.xlu0 %553
      %555 = vrot.lane.b32.xlu0 %v329, 8
      %v556 = vpop.permute.xlu0 %555
      %557 = vrot.lane.b32.xlu0 %v332, 8
      %v558 = vpop.permute.xlu0 %557
      %559 = vrot.lane.b32.xlu0 %v334, 8
      %v560 = vpop.permute.xlu0 %559
      %561 = vrot.lane.b32.xlu0 %v337, 8
      %v562 = vpop.permute.xlu0 %561
      %563 = vrot.lane.b32.xlu0 %v339, 8
      %v564 = vpop.permute.xlu0 %563
      %565 = vrot.lane.b32.xlu0 %v342, 8
      %v566 = vpop.permute.xlu0 %565
      %567 = vrot.lane.b32.xlu0 %v344, 8
      %v568 = vpop.permute.xlu0 %567
      %569 = vrot.lane.b32.xlu0 %v347, 8
      %v570 = vpop.permute.xlu0 %569
      %571 = vrot.lane.b32.xlu0 %v349, 8
      %v572 = vpop.permute.xlu0 %571
      %573 = vrot.lane.b32.xlu0 %v352, 8
      %v574 = vpop.permute.xlu0 %573
      %575 = vrot.lane.b32.xlu0 %v354, 8
      %v576 = vpop.permute.xlu0 %575
      %577 = vrot.lane.b32.xlu0 %v357, 8
      %v578 = vpop.permute.xlu0 %577
      %579 = vrot.lane.b32.xlu0 %v359, 8
      %v580 = vpop.permute.xlu0 %579
      %581 = vrot.lane.b32.xlu0 %v550, 8
      %v582 = vpop.permute.xlu0 %581
      %583 = vrot.lane.b32.xlu0 %v552, 8
      %v584 = vpop.permute.xlu0 %583
      %v601 = vrot.slane %v289, 2
      %v602 = vrot.slane %v290, 2
      %v603 = vsel %vm408, %v601, %v602
      %v604 = vrot.slane %v291, 2
      %v605 = vsel %vm408, %v602, %v604
      %606 = vrot.lane.b32.xlu0 %v416, 10
      %v607 = vpop.permute.xlu0 %606
      %608 = vrot.lane.b32.xlu0 %v418, 10
      %v609 = vpop.permute.xlu0 %608
      %610 = vrot.lane.b32.xlu0 %v421, 10
      %v611 = vpop.permute.xlu0 %610
      %612 = vrot.lane.b32.xlu0 %v423, 10
      %v613 = vpop.permute.xlu0 %612
      %614 = vrot.lane.b32.xlu0 %v426, 10
      %v615 = vpop.permute.xlu0 %614
      %616 = vrot.lane.b32.xlu0 %v428, 10
      %v617 = vpop.permute.xlu0 %616
      %618 = vrot.lane.b32.xlu0 %v431, 10
      %v619 = vpop.permute.xlu0 %618
      %620 = vrot.lane.b32.xlu0 %v433, 10
      %v621 = vpop.permute.xlu0 %620
      %622 = vrot.lane.b32.xlu0 %v436, 10
      %v623 = vpop.permute.xlu0 %622
      %624 = vrot.lane.b32.xlu0 %v438, 10
      %v625 = vpop.permute.xlu0 %624
      %626 = vrot.lane.b32.xlu0 %v441, 10
      %v627 = vpop.permute.xlu0 %626
      %628 = vrot.lane.b32.xlu0 %v443, 10
      %v629 = vpop.permute.xlu0 %628
      %630 = vrot.lane.b32.xlu0 %v446, 10
      %v631 = vpop.permute.xlu0 %630
      %632 = vrot.lane.b32.xlu0 %v448, 10
      %v633 = vpop.permute.xlu0 %632
      %634 = vrot.lane.b32.xlu0 %v603, 10
      %v635 = vpop.permute.xlu0 %634
      %636 = vrot.lane.b32.xlu0 %v605, 10
      %v637 = vpop.permute.xlu0 %636
      %656 = vrot.lane.b32.xlu0 %v271, 12
      %v657 = vpop.permute.xlu0 %656
      %658 = vrot.lane.b32.xlu0 %v272, 12
      %v659 = vpop.permute.xlu0 %658
      %660 = vrot.lane.b32.xlu0 %v274, 12
      %v661 = vpop.permute.xlu0 %660
      %662 = vrot.lane.b32.xlu0 %v275, 12
      %v663 = vpop.permute.xlu0 %662
      %664 = vrot.lane.b32.xlu0 %v277, 12
      %v665 = vpop.permute.xlu0 %664
      %666 = vrot.lane.b32.xlu0 %v278, 12
      %v667 = vpop.permute.xlu0 %666
      %668 = vrot.lane.b32.xlu0 %v280, 12
      %v669 = vpop.permute.xlu0 %668
      %670 = vrot.lane.b32.xlu0 %v281, 12
      %v671 = vpop.permute.xlu0 %670
      %672 = vrot.lane.b32.xlu0 %v283, 12
      %v673 = vpop.permute.xlu0 %672
      %674 = vrot.lane.b32.xlu0 %v284, 12
      %v675 = vpop.permute.xlu0 %674
      %676 = vrot.lane.b32.xlu0 %v286, 12
      %v677 = vpop.permute.xlu0 %676
      %678 = vrot.lane.b32.xlu0 %v287, 12
      %v679 = vpop.permute.xlu0 %678
      %680 = vrot.lane.b32.xlu0 %v289, 12
      %v681 = vpop.permute.xlu0 %680
      %682 = vrot.lane.b32.xlu0 %v290, 12
      %v683 = vpop.permute.xlu0 %682
      %684 = vrot.lane.b32.xlu0 %v292, 12
      %v685 = vpop.permute.xlu0 %684
      %686 = vrot.lane.b32.xlu0 %v293, 12
      %v687 = vpop.permute.xlu0 %686
      %v705 = vrot.slane %v292, 1
      %v706 = vrot.slane %v293, 1
      %v707 = vsel %vm319, %v705, %v706
      %v708 = vrot.slane %v294, 1
      %v709 = vsel %vm319, %v706, %v708
      %710 = vrot.lane.b32.xlu0 %v332, 14
      %v711 = vpop.permute.xlu0 %710
      %712 = vrot.lane.b32.xlu0 %v334, 14
      %v713 = vpop.permute.xlu0 %712
      %714 = vrot.lane.b32.xlu0 %v337, 14
      %v715 = vpop.permute.xlu0 %714
      %716 = vrot.lane.b32.xlu0 %v339, 14
      %v717 = vpop.permute.xlu0 %716
      %718 = vrot.lane.b32.xlu0 %v342, 14
      %v719 = vpop.permute.xlu0 %718
      %720 = vrot.lane.b32.xlu0 %v344, 14
      %v721 = vpop.permute.xlu0 %720
      %722 = vrot.lane.b32.xlu0 %v347, 14
      %v723 = vpop.permute.xlu0 %722
      %724 = vrot.lane.b32.xlu0 %v349, 14
      %v725 = vpop.permute.xlu0 %724
      %726 = vrot.lane.b32.xlu0 %v352, 14
      %v727 = vpop.permute.xlu0 %726
      %728 = vrot.lane.b32.xlu0 %v354, 14
      %v729 = vpop.permute.xlu0 %728
      %730 = vrot.lane.b32.xlu0 %v357, 14
      %v731 = vpop.permute.xlu0 %730
      %732 = vrot.lane.b32.xlu0 %v359, 14
      %v733 = vpop.permute.xlu0 %732
      %734 = vrot.lane.b32.xlu0 %v550, 14
      %v735 = vpop.permute.xlu0 %734
      %736 = vrot.lane.b32.xlu0 %v552, 14
      %v737 = vpop.permute.xlu0 %736
      %738 = vrot.lane.b32.xlu0 %v707, 14
      %v739 = vpop.permute.xlu0 %738
      %740 = vrot.lane.b32.xlu0 %v709, 14
      %v741 = vpop.permute.xlu0 %740
      %v758 = vrot.slane %v292, 2
      %v759 = vrot.slane %v293, 2
      %v760 = vsel %vm408, %v758, %v759
      %v761 = vrot.slane %v294, 2
      %v762 = vsel %vm408, %v759, %v761
      %763 = vrot.lane.b32.xlu0 %v421, 16
      %v764 = vpop.permute.xlu0 %763
      %765 = vrot.lane.b32.xlu0 %v423, 16
      %v766 = vpop.permute.xlu0 %765
      %767 = vrot.lane.b32.xlu0 %v426, 16
      %v768 = vpop.permute.xlu0 %767
      %769 = vrot.lane.b32.xlu0 %v428, 16
      %v770 = vpop.permute.xlu0 %769
      %771 = vrot.lane.b32.xlu0 %v431, 16
      %v772 = vpop.permute.xlu0 %771
      %773 = vrot.lane.b32.xlu0 %v433, 16
      %v774 = vpop.permute.xlu0 %773
      %775 = vrot.lane.b32.xlu0 %v436, 16
      %v776 = vpop.permute.xlu0 %775
      %777 = vrot.lane.b32.xlu0 %v438, 16
      %v778 = vpop.permute.xlu0 %777
      %779 = vrot.lane.b32.xlu0 %v441, 16
      %v780 = vpop.permute.xlu0 %779
      %781 = vrot.lane.b32.xlu0 %v443, 16
      %v782 = vpop.permute.xlu0 %781
      %783 = vrot.lane.b32.xlu0 %v446, 16
      %v784 = vpop.permute.xlu0 %783
      %785 = vrot.lane.b32.xlu0 %v448, 16
      %v786 = vpop.permute.xlu0 %785
      %787 = vrot.lane.b32.xlu0 %v603, 16
      %v788 = vpop.permute.xlu0 %787
      %789 = vrot.lane.b32.xlu0 %v605, 16
      %v790 = vpop.permute.xlu0 %789
      %791 = vrot.lane.b32.xlu0 %v760, 16
      %v792 = vpop.permute.xlu0 %791
      %793 = vrot.lane.b32.xlu0 %v762, 16
      %v794 = vpop.permute.xlu0 %793
      %vm811 = vcmask 15360
      %v812 = vsel %vm811, %v265, %v361
      %v813 = vsel %vm811, %v266, %v363
      %v814 = vsel %vm811, %v268, %v365
      %v815 = vsel %vm811, %v269, %v367
      %v816 = vsel %vm811, %v271, %v369
      %v817 = vsel %vm811, %v272, %v371
      %v818 = vsel %vm811, %v274, %v373
      %v819 = vsel %vm811, %v275, %v375
      %v820 = vsel %vm811, %v277, %v377
      %v821 = vsel %vm811, %v278, %v379
      %v822 = vsel %vm811, %v280, %v381
      %v823 = vsel %vm811, %v281, %v383
      %v824 = vsel %vm811, %v283, %v385
      %v825 = vsel %vm811, %v284, %v387
      %v826 = vsel %vm811, %v286, %v389
      %v827 = vsel %vm811, %v287, %v391
      %vm828 = vcmask 31744
      %v829 = vsel %vm828, %v812, %v450
      %v830 = vsel %vm828, %v813, %v452
      %v831 = vsel %vm828, %v814, %v454
      %v832 = vsel %vm828, %v815, %v456
      %v833 = vsel %vm828, %v816, %v458
      %v834 = vsel %vm828, %v817, %v460
      %v835 = vsel %vm828, %v818, %v462
      %v836 = vsel %vm828, %v819, %v464
      %v837 = vsel %vm828, %v820, %v466
      %v838 = vsel %vm828, %v821, %v468
      %v839 = vsel %vm828, %v822, %v470
      %v840 = vsel %vm828, %v823, %v472
      %v841 = vsel %vm828, %v824, %v474
      %v842 = vsel %vm828, %v825, %v476
      %v843 = vsel %vm828, %v826, %v478
      %v844 = vsel %vm828, %v827, %v480
      %vm845 = vcmask 48128
      %v846 = vsel %vm845, %v829, %v500
      %v847 = vsel %vm845, %v830, %v502
      %v848 = vsel %vm845, %v831, %v504
      %v849 = vsel %vm845, %v832, %v506
      %v850 = vsel %vm845, %v833, %v508
      %v851 = vsel %vm845, %v834, %v510
      %v852 = vsel %vm845, %v835, %v512
      %v853 = vsel %vm845, %v836, %v514
      %v854 = vsel %vm845, %v837, %v516
      %v855 = vsel %vm845, %v838, %v518
      %v856 = vsel %vm845, %v839, %v520
      %v857 = vsel %vm845, %v840, %v522
      %v858 = vsel %vm845, %v841, %v524
      %v859 = vsel %vm845, %v842, %v526
      %v860 = vsel %vm845, %v843, %v528
      %v861 = vsel %vm845, %v844, %v530
      %vm862 = vcmask 64512
      %v863 = vsel %vm862, %v846, %v554
      %v864 = vsel %vm862, %v847, %v556
      %v865 = vsel %vm862, %v848, %v558
      %v866 = vsel %vm862, %v849, %v560
      %v867 = vsel %vm862, %v850, %v562
      %v868 = vsel %vm862, %v851, %v564
      %v869 = vsel %vm862, %v852, %v566
      %v870 = vsel %vm862, %v853, %v568
      %v871 = vsel %vm862, %v854, %v570
      %v872 = vsel %vm862, %v855, %v572
      %v873 = vsel %vm862, %v856, %v574
      %v874 = vsel %vm862, %v857, %v576
      %v875 = vsel %vm862, %v858, %v578
      %v876 = vsel %vm862, %v859, %v580
      %v877 = vsel %vm862, %v860, %v582
      %v878 = vsel %vm862, %v861, %v584
      %vm879 = vcmask 80896
      %v880 = vsel %vm879, %v863, %v607
      %v881 = vsel %vm879, %v864, %v609
      %v882 = vsel %vm879, %v865, %v611
      %v883 = vsel %vm879, %v866, %v613
      %v884 = vsel %vm879, %v867, %v615
      %v885 = vsel %vm879, %v868, %v617
      %v886 = vsel %vm879, %v869, %v619
      %v887 = vsel %vm879, %v870, %v621
      %v888 = vsel %vm879, %v871, %v623
      %v889 = vsel %vm879, %v872, %v625
      %v890 = vsel %vm879, %v873, %v627
      %v891 = vsel %vm879, %v874, %v629
      %v892 = vsel %vm879, %v875, %v631
      %v893 = vsel %vm879, %v876, %v633
      %v894 = vsel %vm879, %v877, %v635
      %v895 = vsel %vm879, %v878, %v637
      %vm896 = vcmask 97280
      %v897 = vsel %vm896, %v880, %v657
      %v898 = vsel %vm896, %v881, %v659
      %v899 = vsel %vm896, %v882, %v661
      %v900 = vsel %vm896, %v883, %v663
      %v901 = vsel %vm896, %v884, %v665
      %v902 = vsel %vm896, %v885, %v667
      %v903 = vsel %vm896, %v886, %v669
      %v904 = vsel %vm896, %v887, %v671
      %v905 = vsel %vm896, %v888, %v673
      %v906 = vsel %vm896, %v889, %v675
      %v907 = vsel %vm896, %v890, %v677
      %v908 = vsel %vm896, %v891, %v679
      %v909 = vsel %vm896, %v892, %v681
      %v910 = vsel %vm896, %v893, %v683
      %v911 = vsel %vm896, %v894, %v685
      %v912 = vsel %vm896, %v895, %v687
      %vm913 = vcmask 113664
      %v914 = vsel %vm913, %v897, %v711
      %v915 = vsel %vm913, %v898, %v713
      %v916 = vsel %vm913, %v899, %v715
      %v917 = vsel %vm913, %v900, %v717
      %v918 = vsel %vm913, %v901, %v719
      %v919 = vsel %vm913, %v902, %v721
      %v920 = vsel %vm913, %v903, %v723
      %v921 = vsel %vm913, %v904, %v725
      %v922 = vsel %vm913, %v905, %v727
      %v923 = vsel %vm913, %v906, %v729
      %v924 = vsel %vm913, %v907, %v731
      %v925 = vsel %vm913, %v908, %v733
      %v926 = vsel %vm913, %v909, %v735
      %v927 = vsel %vm913, %v910, %v737
      %v928 = vsel %vm913, %v911, %v739
      %v929 = vsel %vm913, %v912, %v741
      %vm930 = vcmask 130048
      %v931 = vsel %vm930, %v914, %v764
      %v932 = vsel %vm930, %v915, %v766
      %v933 = vsel %vm930, %v916, %v768
      %v934 = vsel %vm930, %v917, %v770
      %v935 = vsel %vm930, %v918, %v772
      %v936 = vsel %vm930, %v919, %v774
      %v937 = vsel %vm930, %v920, %v776
      %v938 = vsel %vm930, %v921, %v778
      %v939 = vsel %vm930, %v922, %v780
      %v940 = vsel %vm930, %v923, %v782
      %v941 = vsel %vm930, %v924, %v784
      %v942 = vsel %vm930, %v925, %v786
      %v943 = vsel %vm930, %v926, %v788
      %v944 = vsel %vm930, %v927, %v790
      %v945 = vsel %vm930, %v928, %v792
      %v946 = vsel %vm930, %v929, %v794
      %v947 = vld [vmem:[%s1] sm:$0xff]
      %v948 = vld [vmem:[%s1 + $0x8] sm:$0xff]
      %v949 = vld [vmem:[%s1 + $0x10] sm:$0x3]
      %v950 = vld [vmem:[%s2] sm:$0x1]
      %v952 = vlaneseq
      %v953 = vshrl.u32 %v952, 7
      %v954 = vsub.s32 0, %v953
      %v955 = vrot.slane %v950, %v954
      %vm957 = vcmask 146432
      %v959 = vsel %vm957, %v931, 0
      %v962 = vsel %vm957, %v932, 0
      %v965 = vsel %vm957, %v933, 0
      %v968 = vsel %vm957, %v934, 0
      %v971 = vsel %vm957, %v935, 0
      %v974 = vsel %vm957, %v936, 0
      %v977 = vsel %vm957, %v937, 0
      %v980 = vsel %vm957, %v938, 0
      %v983 = vsel %vm957, %v939, 0
      %v986 = vsel %vm957, %v940, 0
      %v989 = vsel %vm957, %v941, 0
      %v992 = vsel %vm957, %v942, 0
      %v995 = vsel %vm957, %v943, 0
      %v998 = vsel %vm957, %v944, 0
      %v1001 = vsel %vm957, %v945, 0
      %v1004 = vsel %vm957, %v946, 0
      %vm1006 = vcmask 1041408
      %v1008 = vsel %vm1006, %v949, 0
      %1010 = vmatprep.subr.mxu0 0.0
      %1011 = vmatpush1.msra.mxu0 0.0
      %1012 = vmatprep.subr.mxu0 0.0
      %1013 = vmatpush1.msra.mxu0 0.0
      %1014 = vmatprep.subr.mxu0 0.0
      %1015 = vmatpush1.msra.mxu0 0.0
      %1016 = vmatprep.subr.mxu0 0.0
      %1017 = vmatpush1.msra.mxu0 0.0
      %1018 = vmatprep.subr.mxu0 0.0
      %1019 = vmatpush1.msra.mxu0 0.0
      %1020 = vmatprep.subr.mxu0 0.0
      %1021 = vmatpush1.msra.mxu0 0.0
      %1022 = vmatprep.subr.mxu0 0.0
      %1023 = vmatpush1.msra.mxu0 0.0
      %1024 = vmatprep.subr.mxu0 0.0
      %1025 = vmatpush1.msra.mxu0 0.0
      %1026 = vmatprep.subr.mxu0 0.0
      %1027 = vmatpush1.msra.mxu0 0.0
      %1028 = vmatprep.subr.mxu0 0.0
      %1029 = vmatpush1.msra.mxu0 0.0
      %1030 = vmatprep.subr.mxu0 0.0
      %1031 = vmatpush1.msra.mxu0 0.0
      %1032 = vmatprep.subr.mxu0 0.0
      %1033 = vmatpush1.msra.mxu0 0.0
      %1034 = vmatprep.subr.mxu0 0.0
      %1035 = vmatpush1.msra.mxu0 0.0
      %1036 = vmatprep.subr.mxu0 0.0
      %1037 = vmatpush1.msra.mxu0 %v1008
      %1038 = vmatprep.subr.mxu0 0.0
      %1039 = vmatpush1.msra.mxu0 %v948
      %1040 = vmatprep.subr.mxu0 0.0
      %1041 = vmatpush1.msra.mxu0 %v947
      %1042 = vmatprep.subr.mxu0 0.0
      %1043 = vmatpush2.msra.mxu0 0.0
      %1044 = vmatprep.subr.mxu0 0.0
      %1045 = vmatpush2.msra.mxu0 0.0
      %1046 = vmatprep.subr.mxu0 0.0
      %1047 = vmatpush2.msra.mxu0 0.0
      %1048 = vmatprep.subr.mxu0 0.0
      %1049 = vmatpush2.msra.mxu0 0.0
      %1050 = vmatprep.subr.mxu0 0.0
      %1051 = vmatpush2.msra.mxu0 0.0
      %1052 = vmatprep.subr.mxu0 0.0
      %1053 = vmatpush2.msra.mxu0 0.0
      %1054 = vmatprep.subr.mxu0 0.0
      %1055 = vmatpush2.msra.mxu0 0.0
      %1056 = vmatprep.subr.mxu0 0.0
      %1057 = vmatpush2.msra.mxu0 0.0
      %1058 = vmatprep.subr.mxu0 0.0
      %1059 = vmatpush2.msra.mxu0 0.0
      %1060 = vmatprep.subr.mxu0 0.0
      %1061 = vmatpush2.msra.mxu0 0.0
      %1062 = vmatprep.subr.mxu0 0.0
      %1063 = vmatpush2.msra.mxu0 0.0
      %1064 = vmatprep.subr.mxu0 0.0
      %1065 = vmatpush2.msra.mxu0 0.0
      %1066 = vmatprep.subr.mxu0 0.0
      %1067 = vmatpush2.msra.mxu0 0.0
      %1068 = vmatprep.subr.mxu0 0.0
      %1069 = vmatpush2.msra.mxu0 0.0
      %1070 = vmatprep.subr.mxu0 0.0
      %1071 = vmatpush2.msra.mxu0 0.0
      %1072 = vmatprep.subr.mxu0 0.0
      %1073 = vmatpush2.msra.mxu0 0.0
      %1074 = vmatprep.mubr.f32.mxu0 0.0
      %1075 = vmatmul.mubr.f32.gmra.mxu0 %v959
      %v1076 = vpop.f32.mrf.mxu0
      %v1077 = vadd.f32 %v955, %v1076
      %v1078 = vpop.f32.mrf.mxu0
      %1079 = vmatprep.mubr.f32.mxu0 0.0
      %1080 = vmatmul.mubr.f32.gmra.mxu0 %v962
      %v1081 = vpop.f32.mrf.mxu0
      %v1082 = vadd.f32 %v955, %v1081
      %v1083 = vpop.f32.mrf.mxu0
      %1084 = vmatprep.mubr.f32.mxu0 0.0
      %1085 = vmatmul.mubr.f32.gmra.mxu0 %v965
      %v1086 = vpop.f32.mrf.mxu0
      %v1087 = vadd.f32 %v955, %v1086
      %v1088 = vpop.f32.mrf.mxu0
      %1089 = vmatprep.mubr.f32.mxu0 0.0
      %1090 = vmatmul.mubr.f32.gmra.mxu0 %v968
      %v1091 = vpop.f32.mrf.mxu0
      %v1092 = vadd.f32 %v955, %v1091
      %v1093 = vpop.f32.mrf.mxu0
      %1094 = vmatprep.mubr.f32.mxu0 0.0
      %1095 = vmatmul.mubr.f32.gmra.mxu0 %v971
      %v1096 = vpop.f32.mrf.mxu0
      %v1097 = vadd.f32 %v955, %v1096
      %v1098 = vpop.f32.mrf.mxu0
      %1099 = vmatprep.mubr.f32.mxu0 0.0
      %1100 = vmatmul.mubr.f32.gmra.mxu0 %v974
      %v1101 = vpop.f32.mrf.mxu0
      %v1102 = vadd.f32 %v955, %v1101
      %v1103 = vpop.f32.mrf.mxu0
      %1104 = vmatprep.mubr.f32.mxu0 0.0
      %1105 = vmatmul.mubr.f32.gmra.mxu0 %v977
      %v1106 = vpop.f32.mrf.mxu0
      %v1107 = vadd.f32 %v955, %v1106
      %v1108 = vpop.f32.mrf.mxu0
      %1109 = vmatprep.mubr.f32.mxu0 0.0
      %1110 = vmatmul.mubr.f32.gmra.mxu0 %v980
      %v1111 = vpop.f32.mrf.mxu0
      %v1112 = vadd.f32 %v955, %v1111
      %v1113 = vpop.f32.mrf.mxu0
      %1114 = vmatprep.mubr.f32.mxu0 0.0
      %1115 = vmatmul.mubr.f32.gmra.mxu0 %v983
      %v1116 = vpop.f32.mrf.mxu0
      %v1117 = vadd.f32 %v955, %v1116
      %v1118 = vpop.f32.mrf.mxu0
      %1119 = vmatprep.mubr.f32.mxu0 0.0
      %1120 = vmatmul.mubr.f32.gmra.mxu0 %v986
      %v1121 = vpop.f32.mrf.mxu0
      %v1122 = vadd.f32 %v955, %v1121
      %v1123 = vpop.f32.mrf.mxu0
      %1124 = vmatprep.mubr.f32.mxu0 0.0
      %1125 = vmatmul.mubr.f32.gmra.mxu0 %v989
      %v1126 = vpop.f32.mrf.mxu0
      %v1127 = vadd.f32 %v955, %v1126
      %v1128 = vpop.f32.mrf.mxu0
      %1129 = vmatprep.mubr.f32.mxu0 0.0
      %1130 = vmatmul.mubr.f32.gmra.mxu0 %v992
      %v1131 = vpop.f32.mrf.mxu0
      %v1132 = vadd.f32 %v955, %v1131
      %v1133 = vpop.f32.mrf.mxu0
      %1134 = vmatprep.mubr.f32.mxu0 0.0
      %1135 = vmatmul.mubr.f32.gmra.mxu0 %v995
      %v1136 = vpop.f32.mrf.mxu0
      %v1137 = vadd.f32 %v955, %v1136
      %v1138 = vpop.f32.mrf.mxu0
      %1139 = vmatprep.mubr.f32.mxu0 0.0
      %1140 = vmatmul.mubr.f32.gmra.mxu0 %v998
      %v1141 = vpop.f32.mrf.mxu0
      %v1142 = vadd.f32 %v955, %v1141
      %v1143 = vpop.f32.mrf.mxu0
      %1144 = vmatprep.mubr.f32.mxu0 0.0
      %1145 = vmatmul.mubr.f32.gmra.mxu0 %v1001
      %v1146 = vpop.f32.mrf.mxu0
      %v1147 = vadd.f32 %v955, %v1146
      %v1148 = vpop.f32.mrf.mxu0
      %1149 = vmatprep.mubr.f32.mxu0 0.0
      %1150 = vmatmul.mubr.f32.gmra.mxu0 %v1004
      %v1151 = vpop.f32.mrf.mxu0
      %v1152 = vadd.f32 %v955, %v1151
      %v1153 = vpop.f32.mrf.mxu0
      %1154 = vdwg.mxu0
      %v1155 = vld [vmem:[%s249] sm:$0xff]
      %v1156 = vld [vmem:[%s249 + $0x8] sm:$0xff]
      %v1157 = vld [vmem:[%s249 + $0x10] sm:$0xff]
      %v1158 = vld [vmem:[%s249 + $0x18] sm:$0xff]
      %v1159 = vld [vmem:[%s249 + $0x20] sm:$0xff]
      %v1160 = vld [vmem:[%s249 + $0x28] sm:$0xff]
      %v1161 = vld [vmem:[%s249 + $0x30] sm:$0xff]
      %v1162 = vld [vmem:[%s249 + $0x38] sm:$0xff]
      %v1163 = vld [vmem:[%s249 + $0x40] sm:$0xff]
      %v1164 = vld [vmem:[%s249 + $0x48] sm:$0xff]
      %v1165 = vld [vmem:[%s249 + $0x50] sm:$0xff]
      %v1166 = vld [vmem:[%s249 + $0x58] sm:$0xff]
      %v1167 = vld [vmem:[%s249 + $0x60] sm:$0xff]
      %v1168 = vld [vmem:[%s249 + $0x68] sm:$0xff]
      %v1169 = vld [vmem:[%s249 + $0x70] sm:$0xff]
      %v1170 = vld [vmem:[%s249 + $0x78] sm:$0xff]
      %v1171 = vadd.f32 %v1077, %v1155
      %v1172 = vadd.f32 %v1082, %v1156
      %v1173 = vadd.f32 %v1087, %v1157
      %v1174 = vadd.f32 %v1092, %v1158
      %v1175 = vadd.f32 %v1097, %v1159
      %v1176 = vadd.f32 %v1102, %v1160
      %v1177 = vadd.f32 %v1107, %v1161
      %v1178 = vadd.f32 %v1112, %v1162
      %v1179 = vadd.f32 %v1117, %v1163
      %v1180 = vadd.f32 %v1122, %v1164
      %v1181 = vadd.f32 %v1127, %v1165
      %v1182 = vadd.f32 %v1132, %v1166
      %v1183 = vadd.f32 %v1137, %v1167
      %v1184 = vadd.f32 %v1142, %v1168
      %v1185 = vadd.f32 %v1147, %v1169
      %v1186 = vadd.f32 %v1152, %v1170
      %1187 = vst.msk [vmem:[%s260] sm:$0xff] %vm828, %v1171
      %1188 = vst.msk [vmem:[%s260 + $0x8] sm:$0xff] %vm828, %v1172
      %1189 = vst.msk [vmem:[%s260 + $0x10] sm:$0xff] %vm828, %v1173
      %1190 = vst.msk [vmem:[%s260 + $0x18] sm:$0xff] %vm828, %v1174
      %1191 = vst.msk [vmem:[%s260 + $0x20] sm:$0xff] %vm828, %v1175
      %1192 = vst.msk [vmem:[%s260 + $0x28] sm:$0xff] %vm828, %v1176
      %1193 = vst.msk [vmem:[%s260 + $0x30] sm:$0xff] %vm828, %v1177
      %1194 = vst.msk [vmem:[%s260 + $0x38] sm:$0xff] %vm828, %v1178
      %1195 = vst.msk [vmem:[%s260 + $0x40] sm:$0xff] %vm828, %v1179
      %1196 = vst.msk [vmem:[%s260 + $0x48] sm:$0xff] %vm828, %v1180
      %1197 = vst.msk [vmem:[%s260 + $0x50] sm:$0xff] %vm828, %v1181
      %1198 = vst.msk [vmem:[%s260 + $0x58] sm:$0xff] %vm828, %v1182
      %1199 = vst.msk [vmem:[%s260 + $0x60] sm:$0xff] %vm828, %v1183
      %1200 = vst.msk [vmem:[%s260 + $0x68] sm:$0xff] %vm828, %v1184
      %1201 = vst.msk [vmem:[%s260 + $0x70] sm:$0xff] %vm828, %v1185
      %1202 = vst.msk [vmem:[%s260 + $0x78] sm:$0xff] %vm828, %v1186
      %s1203 = smul.u32 8, %s20
      %p1204 = scmp.lt.s32.totalorder %s19, 1
      %s1205 = scalar_select %p1204, %s19, 1
      %p1206 = scmp.lt.s32.totalorder %s1203, 15
      %s1207 = scalar_select %p1206, %s1203, 15
      %s1208 = smul.addr %s1207, 2
      %s1209 = smul.addr %s1205, 32
      %s1210 = sadd.s32 %s1208, %s1209
      %s1211 = smul.addr %s1210, 8
      %s1212 = scalar_lea.vmem %s4, %s1211
      // Predicated region
      $region37: #{spatial_attention_wh_forward.5} parent=35 // pred_check
        %p1213 = pneg %p143
      $region38: #{spatial_attention_wh_forward.5} parent=35 // pred_check_branch
        %1215 = sbr.rel (%p1213) target = $region40
      $region39: #{spatial_attention_wh_forward.5} parent=35 // pred_region
        %s1216 = smul.u32 8, %s20
      $region40: #{spatial_attention_wh_forward.5} parent=35 // pred_fallthru
        _
    $region36: #{spatial_attention_wh_forward.5} parent=5 // pred_fallthru
      _
    %p1217 = scmp.le.s32.totalorder 2, %s10
    // Predicated region
    $region41: #{spatial_attention_wh_forward.5} parent=5 // pred_check
      %p1218 = pneg %p1217
    $region42: #{spatial_attention_wh_forward.5} parent=5 // pred_check_branch
      %1220 = sbr.rel (%p1218) target = $region44
    $region43: #{spatial_attention_wh_forward.5} parent=5 // pred_region
      %s1221 = ssub.s32 %s10, 2
      // Predicated region
      $region45: #{spatial_attention_wh_forward.5} parent=43 // pred_check
        %p1222 = pneg %p149
      $region46: #{spatial_attention_wh_forward.5} parent=43 // pred_check_branch
        %1224 = sbr.rel (%p1222) target = $region48
      $region47: #{spatial_attention_wh_forward.5} parent=43 // pred_region
        %s1225 = smul.u32 8, %s22
        %p1226 = scmp.lt.s32.totalorder %s21, 1
        %s1227 = scalar_select %p1226, %s21, 1
        %p1228 = scmp.lt.s32.totalorder %s1225, 15
        %s1229 = scalar_select %p1228, %s1225, 15
        %s1230 = smul.addr %s1229, 2
        %s1231 = smul.addr %s1227, 32
        %s1232 = sadd.s32 %s1230, %s1231
        %s1233 = smul.addr %s1232, 8
        %s1234 = scalar_lea.vmem %s4, %s1233
      $region48: #{spatial_attention_wh_forward.5} parent=43 // pred_fallthru
        _
    $region44: #{spatial_attention_wh_forward.5} parent=5 // pred_fallthru
      _
  $region6: #{spatial_attention_wh_forward.5} parent=0 // loop_footer
    %s14 = sadd.s32 1, %s10
  $region7: #{spatial_attention_wh_forward.5} parent=0 // loop_footer_branch
    %9 = sbr.rel target = $region3
  $region8: #{spatial_attention_wh_forward.5} parent=0 // loop_exit
    _

</llo_original>
